<compile_context>
chip_gen: v5e
topology: v5e:2x2
jax: 0.10.0
libtpu: 0.0.40
codegen_flags: <defaults>
</compile_context>

<pallas_src>
import functools

import jax
import jax.numpy as jnp
from jax.experimental import pallas as pl
from jax.experimental.pallas import tpu as pltpu

DP = 128        # lane-dense padded channel width (multiple of 128)
CLS_HID = 512   # classifier hidden width (already lane dense)


# --------------------------------------------------------------------------
# Fused forward kernel (one grid step == one batch sample)
# --------------------------------------------------------------------------
def _fused_forward_kernel(
        x_ref, oh_ref,
        w1_ref, b1_ref, w2_ref, b2_ref,
        wfa_ref, wfe_ref, bf_ref,
        wt1_ref, bt1_ref, wt2_ref, bt2_ref,
        wo1_ref, bo1_ref, wo2_ref, bo2_ref,
        wc1_ref, bc1_ref, wc2_ref, bc2_ref, wc3_ref, bc3_ref,
        cls_ref, vfe_ref,
        fz_ref, ht_ref,
        *, nr_frames, nr_boxes):
    T, N = nr_frames, nr_boxes
    f32 = jnp.float32

    def mm(a, b):
        return jnp.dot(a, b, preferred_element_type=f32)

    x = x_ref[0]     # (T*N, N*4)  pairwise bbox differences (t-major rows)
    oh = oh_ref[0]   # (T*N, 8)    one-hot box category (padded to 8)

    # ---- interaction MLP (BN folded into weights) --------------------------
    h = jnp.maximum(mm(x, w1_ref[...]) + b1_ref[...], 0.0)          # (T*N, DP)
    inter = jnp.maximum(mm(h, w2_ref[...]) + b2_ref[...], 0.0)      # (T*N, DP)

    # ---- fuse layer: concat([inter, embed[cat]]) @ Wf
    #       == inter @ Wfa + onehot @ (embed @ Wfb)   (all BN-folded) ---------
    fz_ref[...] = jnp.maximum(
        mm(inter, wfa_ref[...]) + mm(oh, wfe_ref[...]) + bf_ref[...], 0.0)

    # ---- temporal aggregation (per box) ------------------------------------
    # (T,N,D)->(N,T*D) transpose+flatten folded into a sum of per-frame
    # matmuls against 128-row blocks of Wt1.
    acc = jnp.zeros((N, DP), f32)
    for t in range(T):
        acc = acc + mm(fz_ref[t * N:(t + 1) * N, :],
                       wt1_ref[t * DP:(t + 1) * DP, :])
    ht = jnp.maximum(acc + bt1_ref[...], 0.0)
    ht_ref[...] = jnp.maximum(mm(ht, wt2_ref[...]) + bt2_ref[...], 0.0)  # (N, DP)

    # ---- object composition (per video) ------------------------------------
    # (N,D)->(1,N*D) flatten folded into per-box matmuls against Wo1 blocks.
    acc2 = jnp.zeros((1, DP), f32)
    for n in range(N):
        acc2 = acc2 + mm(ht_ref[n:n + 1, :], wo1_ref[n * DP:(n + 1) * DP, :])
    ho = jnp.maximum(acc2 + bo1_ref[...], 0.0)
    vfe = jnp.maximum(mm(ho, wo2_ref[...]) + bo2_ref[...], 0.0)          # (1, DP)

    # ---- classifier ----------------------------------------------------------
    c = jnp.maximum(mm(vfe, wc1_ref[...]) + bc1_ref[...], 0.0)
    c = jnp.maximum(mm(c, wc2_ref[...]) + bc2_ref[...], 0.0)             # (1, 512)
    c = mm(c, wc3_ref[...]) + bc3_ref[...]                               # (1, DP)

    cls_ref[0] = c
    vfe_ref[0] = vfe


# --------------------------------------------------------------------------
# Parameters (deterministic, synthetic) — PyTorch-equivalent raw parameters
# --------------------------------------------------------------------------
def _fold_bn(gamma, beta, mean, var, eps=1e-5):
    scale = gamma * jax.lax.rsqrt(var + eps)
    bias = beta - mean * scale
    return scale, bias


def _init_bn(key, c):
    k1, k2, k3, k4 = jax.random.split(key, 4)
    gamma = jax.random.uniform(k1, (c,), jnp.float32, 0.5, 1.5)
    beta = jax.random.normal(k2, (c,), jnp.float32) * 0.1
    mean = jax.random.normal(k3, (c,), jnp.float32) * 0.1
    var = jax.random.uniform(k4, (c,), jnp.float32, 0.5, 1.5)
    return gamma, beta, mean, var


def _init_linear(key, fan_in, fan_out, bias=False):
    kw, kb = jax.random.split(key)
    bound = 1.0 / jnp.sqrt(fan_in)
    w = jax.random.uniform(kw, (fan_in, fan_out), jnp.float32, -bound, bound)
    if bias:
        b = jax.random.uniform(kb, (fan_out,), jnp.float32, -bound, bound)
        return w, b
    return w


def init_params(key, nr_boxes, nr_frames, coord_dim, nr_actions):
    D = coord_dim
    H = D // 2
    ks = jax.random.split(key, 20)
    p = {}
    p["inter_w1"] = _init_linear(ks[0], nr_boxes * 4, H)
    p["inter_bn1"] = _init_bn(ks[1], H)
    p["inter_w2"] = _init_linear(ks[2], H, D)
    p["inter_bn2"] = _init_bn(ks[3], D)
    emb = jax.random.normal(ks[4], (3, H), jnp.float32)
    p["embed"] = emb.at[0].set(0.0)                    # padding_idx=0 row zero
    p["fuse_w"] = _init_linear(ks[5], D + H, D)
    p["fuse_bn"] = _init_bn(ks[6], D)
    p["temp_w1"] = _init_linear(ks[7], nr_frames * D, D)
    p["temp_bn1"] = _init_bn(ks[8], D)
    p["temp_w2"] = _init_linear(ks[9], D, D)
    p["temp_bn2"] = _init_bn(ks[10], D)
    p["obj_w1"] = _init_linear(ks[11], nr_boxes * D, D)
    p["obj_bn1"] = _init_bn(ks[12], D)
    p["obj_w2"] = _init_linear(ks[13], D, D)
    p["obj_bn2"] = _init_bn(ks[14], D)
    p["cls_w1"], p["cls_b1"] = _init_linear(ks[15], D, D, bias=True)
    p["cls_w2"], p["cls_b2"] = _init_linear(ks[16], D, CLS_HID, bias=True)
    p["cls_w3"], p["cls_b3"] = _init_linear(ks[17], CLS_HID, nr_actions, bias=True)
    return p


# --------------------------------------------------------------------------
# One-time prep: fold BN into weights, split fuse weight, pad to 128 lanes
# --------------------------------------------------------------------------
def _pad2(w, rows, cols):
    out = jnp.zeros((rows, cols), jnp.float32)
    return out.at[:w.shape[0], :w.shape[1]].set(w)


def prepare_kernel_params(p, *, nr_boxes, nr_frames, coord_dim, nr_actions):
    D, H, T, N = coord_dim, coord_dim // 2, nr_frames, nr_boxes
    assert D <= DP and H <= DP and nr_actions <= DP
    kp = {}

    s, bb = _fold_bn(*p["inter_bn1"])
    kp["w1"] = _pad2(p["inter_w1"] * s[None, :], N * 4, DP)        # (16, 128)
    kp["b1"] = _pad2(bb[None, :], 1, DP)
    s, bb = _fold_bn(*p["inter_bn2"])
    kp["w2"] = _pad2(p["inter_w2"] * s[None, :], DP, DP)
    kp["b2"] = _pad2(bb[None, :], 1, DP)

    s, bb = _fold_bn(*p["fuse_bn"])
    wa = p["fuse_w"][:D, :] * s[None, :]                           # inter part
    wb = p["fuse_w"][D:, :] * s[None, :]                           # embed part
    kp["wfa"] = _pad2(wa, DP, DP)
    kp["wfe"] = _pad2(p["embed"] @ wb, 8, DP)                      # (3,D)->(8,128)
    kp["bf"] = _pad2(bb[None, :], 1, DP)

    s, bb = _fold_bn(*p["temp_bn1"])
    w = p["temp_w1"] * s[None, :]                                  # (T*D, D)
    wt1 = jnp.zeros((T * DP, DP), jnp.float32)
    for t in range(T):
        wt1 = wt1.at[t * DP:t * DP + D, :D].set(w[t * D:(t + 1) * D, :])
    kp["wt1"] = wt1
    kp["bt1"] = _pad2(bb[None, :], 1, DP)
    s, bb = _fold_bn(*p["temp_bn2"])
    kp["wt2"] = _pad2(p["temp_w2"] * s[None, :], DP, DP)
    kp["bt2"] = _pad2(bb[None, :], 1, DP)

    s, bb = _fold_bn(*p["obj_bn1"])
    w = p["obj_w1"] * s[None, :]                                   # (N*D, D)
    wo1 = jnp.zeros((N * DP, DP), jnp.float32)
    for n in range(N):
        wo1 = wo1.at[n * DP:n * DP + D, :D].set(w[n * D:(n + 1) * D, :])
    kp["wo1"] = wo1
    kp["bo1"] = _pad2(bb[None, :], 1, DP)
    s, bb = _fold_bn(*p["obj_bn2"])
    kp["wo2"] = _pad2(p["obj_w2"] * s[None, :], DP, DP)
    kp["bo2"] = _pad2(bb[None, :], 1, DP)

    kp["wc1"] = _pad2(p["cls_w1"], DP, DP)
    kp["bc1"] = _pad2(p["cls_b1"][None, :], 1, DP)
    kp["wc2"] = _pad2(p["cls_w2"], DP, CLS_HID)
    kp["bc2"] = p["cls_b2"][None, :]                               # (1, 512)
    kp["wc3"] = _pad2(p["cls_w3"], CLS_HID, DP)
    kp["bc3"] = _pad2(p["cls_b3"][None, :], 1, DP)
    return kp


# --------------------------------------------------------------------------
# Forward pass: ONE pallas_call, grid over batch
# --------------------------------------------------------------------------
_WEIGHT_ORDER = ("w1", "b1", "w2", "b2", "wfa", "wfe", "bf",
                 "wt1", "bt1", "wt2", "bt2", "wo1", "bo1", "wo2", "bo2",
                 "wc1", "bc1", "wc2", "bc2", "wc3", "bc3")


def _full_spec(shape):
    nd = len(shape)
    return pl.BlockSpec(shape, lambda i, _nd=nd: (0,) * _nd)


def forward(kparams, box_categories, box_input, *, nr_frames, nr_boxes,
            coord_dim, nr_actions):
    b, T, N, _ = box_input.shape
    assert T == nr_frames and N == nr_boxes
    D = coord_dim

    # glue kept in JAX, but fed to the kernel already flattened per sample
    diff = box_input[:, :, :, None, :] - box_input[:, :, None, :, :]
    x = diff.reshape(b, T * N, N * 4).astype(jnp.float32)          # (b, 16, 16)
    oh = jax.nn.one_hot(box_categories.reshape(b, T * N).astype(jnp.int32),
                        8, dtype=jnp.float32)                      # (b, 16, 8)

    weights = [kparams[k] for k in _WEIGHT_ORDER]
    kern = functools.partial(_fused_forward_kernel, nr_frames=T, nr_boxes=N)

    cls_p, vfe_p = pl.pallas_call(
        kern,
        out_shape=(jax.ShapeDtypeStruct((b, 1, DP), jnp.float32),
                   jax.ShapeDtypeStruct((b, 1, DP), jnp.float32)),
        grid=(b,),
        in_specs=[pl.BlockSpec((1, T * N, N * 4), lambda i: (i, 0, 0)),
                  pl.BlockSpec((1, T * N, 8), lambda i: (i, 0, 0))]
                 + [_full_spec(w.shape) for w in weights],
        out_specs=(pl.BlockSpec((1, 1, DP), lambda i: (i, 0, 0)),
                   pl.BlockSpec((1, 1, DP), lambda i: (i, 0, 0))),
        scratch_shapes=[pltpu.VMEM((T * N, DP), jnp.float32),   # fused features
                        pltpu.VMEM((N, DP), jnp.float32)],      # per-box features
        compiler_params=pltpu.CompilerParams(
            dimension_semantics=("parallel",)),
    )(x, oh, *weights)

    return cls_p[:, 0, :nr_actions], vfe_p[:, 0, :D]


# --------------------------------------------------------------------------
# Pure-JAX reference (mirrors the PyTorch module, raw unfolded parameters)
# --------------------------------------------------------------------------
def forward_reference(p, box_categories, box_input, *, nr_frames, nr_boxes,
                      coord_dim):
    b = box_input.shape[0]
    T, N, D = nr_frames, nr_boxes, coord_dim

    def lin(x, w, scale, bias, relu=True):
        y = (x @ w) * scale[None, :] + bias[None, :]
        return jnp.maximum(y, 0.0) if relu else y

    cats = box_categories.reshape(b * T * N).astype(jnp.int32)
    identity = p["embed"][cats]
    diff = box_input[:, :, :, None, :] - box_input[:, :, None, :, :]
    x = diff.reshape(b * T * N, N * 4)

    s, bb = _fold_bn(*p["inter_bn1"]); h = lin(x, p["inter_w1"], s, bb)
    s, bb = _fold_bn(*p["inter_bn2"]); inter = lin(h, p["inter_w2"], s, bb)
    fused_in = jnp.concatenate([inter, identity], axis=-1)
    s, bb = _fold_bn(*p["fuse_bn"]); fused = lin(fused_in, p["fuse_w"], s, bb)
    fused = fused.reshape(b, T, N, D).transpose(0, 2, 1, 3).reshape(b * N, T * D)
    s, bb = _fold_bn(*p["temp_bn1"]); h = lin(fused, p["temp_w1"], s, bb)
    s, bb = _fold_bn(*p["temp_bn2"]); frame_fea = lin(h, p["temp_w2"], s, bb)
    obj_in = frame_fea.reshape(b, N * D)
    s, bb = _fold_bn(*p["obj_bn1"]); h = lin(obj_in, p["obj_w1"], s, bb)
    s, bb = _fold_bn(*p["obj_bn2"]); video_fe = lin(h, p["obj_w2"], s, bb)
    h = jnp.maximum(video_fe @ p["cls_w1"] + p["cls_b1"][None, :], 0.0)
    h = jnp.maximum(h @ p["cls_w2"] + p["cls_b2"][None, :], 0.0)
    cls = h @ p["cls_w3"] + p["cls_b3"][None, :]
    return cls, video_fe


# --------------------------------------------------------------------------
# Demo / self-check
# --------------------------------------------------------------------------
if __name__ == "__main__":
    # opt: num_boxes=4, num_classes=10, num_frames=8 (-> nr_frames=4),
    #      coord_feature_dim=32
    nr_boxes = 4
    nr_actions = 10
    nr_frames = 4          # num_frames // 2
    coord_dim = 32
    batch = 2

    key = jax.random.PRNGKey(0)
    k_par, k_box, k_cat = jax.random.split(key, 3)

    params = init_params(k_par, nr_boxes, nr_frames, coord_dim, nr_actions)
    kparams = prepare_kernel_params(params, nr_boxes=nr_boxes,
                                    nr_frames=nr_frames, coord_dim=coord_dim,
                                    nr_actions=nr_actions)

    box_input = jax.random.uniform(
        k_box, (batch, nr_frames, nr_boxes, 4), jnp.float32)
    box_categories = jax.random.randint(
        k_cat, (batch, nr_frames, nr_boxes), 0, 3, jnp.int32)

    run = jax.jit(functools.partial(
        forward, nr_frames=nr_frames, nr_boxes=nr_boxes,
        coord_dim=coord_dim, nr_actions=nr_actions))

    cls_out, video_fe = jax.block_until_ready(
        run(kparams, box_categories, box_input))

    cls_ref, vid_ref = forward_reference(
        params, box_categories, box_input, nr_frames=nr_frames,
        nr_boxes=nr_boxes, coord_dim=coord_dim)

    assert cls_out.shape == (batch, nr_actions)
    assert video_fe.shape == (batch, coord_dim)
    assert jnp.allclose(cls_out, cls_ref, rtol=1e-3, atol=1e-3), (
        float(jnp.max(jnp.abs(cls_out - cls_ref))))
    assert jnp.allclose(video_fe, vid_ref, rtol=1e-3, atol=1e-3), (
        float(jnp.max(jnp.abs(video_fe - vid_ref))))

    print("KERNEL_OK")
</pallas_src>

<mosaic_0001>
module attributes {stable_mosaic.version = 11 : i64} {
  func.func @_fused_forward_kernel(%arg0: i32, %arg1: memref<1x16x16xf32, #tpu.memory_space<vmem>>, %arg2: memref<1x16x8xf32, #tpu.memory_space<vmem>>, %arg3: memref<16x128xf32, #tpu.memory_space<vmem>>, %arg4: memref<1x128xf32, #tpu.memory_space<vmem>>, %arg5: memref<128x128xf32, #tpu.memory_space<vmem>>, %arg6: memref<1x128xf32, #tpu.memory_space<vmem>>, %arg7: memref<128x128xf32, #tpu.memory_space<vmem>>, %arg8: memref<8x128xf32, #tpu.memory_space<vmem>>, %arg9: memref<1x128xf32, #tpu.memory_space<vmem>>, %arg10: memref<512x128xf32, #tpu.memory_space<vmem>>, %arg11: memref<1x128xf32, #tpu.memory_space<vmem>>, %arg12: memref<128x128xf32, #tpu.memory_space<vmem>>, %arg13: memref<1x128xf32, #tpu.memory_space<vmem>>, %arg14: memref<512x128xf32, #tpu.memory_space<vmem>>, %arg15: memref<1x128xf32, #tpu.memory_space<vmem>>, %arg16: memref<128x128xf32, #tpu.memory_space<vmem>>, %arg17: memref<1x128xf32, #tpu.memory_space<vmem>>, %arg18: memref<128x128xf32, #tpu.memory_space<vmem>>, %arg19: memref<1x128xf32, #tpu.memory_space<vmem>>, %arg20: memref<128x512xf32, #tpu.memory_space<vmem>>, %arg21: memref<1x512xf32, #tpu.memory_space<vmem>>, %arg22: memref<512x128xf32, #tpu.memory_space<vmem>>, %arg23: memref<1x128xf32, #tpu.memory_space<vmem>>, %arg24: memref<1x1x128xf32, #tpu.memory_space<vmem>>, %arg25: memref<1x1x128xf32, #tpu.memory_space<vmem>>, %arg26: memref<16x128xf32, #tpu.memory_space<vmem>>, %arg27: memref<4x128xf32, #tpu.memory_space<vmem>>) attributes {dimension_semantics = [#tpu.dimension_semantics<parallel>], iteration_bounds = array<i64: 2>, scalar_prefetch = 0 : i64, scratch_operands = 2 : i64, tpu.core_type = #tpu.core_type<tc>, window_params = [{transform_indices = @transform_0, window_bounds = array<i64: 1, 16, 16>}, {transform_indices = @transform_1, window_bounds = array<i64: 1, 16, 8>}, {pipeline_mode = #tpu.pipeline_mode<synchronous>, transform_indices = @transform_2, window_bounds = array<i64: 16, 128>}, {pipeline_mode = #tpu.pipeline_mode<synchronous>, transform_indices = @transform_3, window_bounds = array<i64: 1, 128>}, {pipeline_mode = #tpu.pipeline_mode<synchronous>, transform_indices = @transform_4, window_bounds = array<i64: 128, 128>}, {pipeline_mode = #tpu.pipeline_mode<synchronous>, transform_indices = @transform_5, window_bounds = array<i64: 1, 128>}, {pipeline_mode = #tpu.pipeline_mode<synchronous>, transform_indices = @transform_6, window_bounds = array<i64: 128, 128>}, {pipeline_mode = #tpu.pipeline_mode<synchronous>, transform_indices = @transform_7, window_bounds = array<i64: 8, 128>}, {pipeline_mode = #tpu.pipeline_mode<synchronous>, transform_indices = @transform_8, window_bounds = array<i64: 1, 128>}, {pipeline_mode = #tpu.pipeline_mode<synchronous>, transform_indices = @transform_9, window_bounds = array<i64: 512, 128>}, {pipeline_mode = #tpu.pipeline_mode<synchronous>, transform_indices = @transform_10, window_bounds = array<i64: 1, 128>}, {pipeline_mode = #tpu.pipeline_mode<synchronous>, transform_indices = @transform_11, window_bounds = array<i64: 128, 128>}, {pipeline_mode = #tpu.pipeline_mode<synchronous>, transform_indices = @transform_12, window_bounds = array<i64: 1, 128>}, {pipeline_mode = #tpu.pipeline_mode<synchronous>, transform_indices = @transform_13, window_bounds = array<i64: 512, 128>}, {pipeline_mode = #tpu.pipeline_mode<synchronous>, transform_indices = @transform_14, window_bounds = array<i64: 1, 128>}, {pipeline_mode = #tpu.pipeline_mode<synchronous>, transform_indices = @transform_15, window_bounds = array<i64: 128, 128>}, {pipeline_mode = #tpu.pipeline_mode<synchronous>, transform_indices = @transform_16, window_bounds = array<i64: 1, 128>}, {pipeline_mode = #tpu.pipeline_mode<synchronous>, transform_indices = @transform_17, window_bounds = array<i64: 128, 128>}, {pipeline_mode = #tpu.pipeline_mode<synchronous>, transform_indices = @transform_18, window_bounds = array<i64: 1, 128>}, {pipeline_mode = #tpu.pipeline_mode<synchronous>, transform_indices = @transform_19, window_bounds = array<i64: 128, 512>}, {pipeline_mode = #tpu.pipeline_mode<synchronous>, transform_indices = @transform_20, window_bounds = array<i64: 1, 512>}, {pipeline_mode = #tpu.pipeline_mode<synchronous>, transform_indices = @transform_21, window_bounds = array<i64: 512, 128>}, {pipeline_mode = #tpu.pipeline_mode<synchronous>, transform_indices = @transform_22, window_bounds = array<i64: 1, 128>}, {transform_indices = @transform_23, window_bounds = array<i64: 1, 1, 128>}, {transform_indices = @transform_24, window_bounds = array<i64: 1, 1, 128>}]} {
    %c0 = arith.constant 0 : index
    %c0_0 = arith.constant 0 : index
    %c0_1 = arith.constant 0 : index
    %0 = vector.load %arg1[%c0, %c0_0, %c0_1] : memref<1x16x16xf32, #tpu.memory_space<vmem>>, vector<1x16x16xf32>
    %1 = vector.shape_cast %0 : vector<1x16x16xf32> to vector<16x16xf32>
    %c0_2 = arith.constant 0 : index
    %c0_3 = arith.constant 0 : index
    %c0_4 = arith.constant 0 : index
    %2 = vector.load %arg2[%c0_2, %c0_3, %c0_4] : memref<1x16x8xf32, #tpu.memory_space<vmem>>, vector<1x16x8xf32>
    %3 = vector.shape_cast %2 : vector<1x16x8xf32> to vector<16x8xf32>
    %c0_5 = arith.constant 0 : index
    %c0_6 = arith.constant 0 : index
    %4 = vector.load %arg3[%c0_5, %c0_6] : memref<16x128xf32, #tpu.memory_space<vmem>>, vector<16x128xf32>
    %cst = arith.constant dense<0.000000e+00> : vector<16x128xf32>
    %5 = tpu.matmul %1, %4, %cst {dimension_numbers = #tpu.dot_dimension_numbers<[1], [0], [0], [1], [0, 0, 1, 1], [], []>} : vector<16x16xf32>, vector<16x128xf32>, vector<16x128xf32> -> vector<16x128xf32>
    %c0_7 = arith.constant 0 : index
    %c0_8 = arith.constant 0 : index
    %6 = vector.load %arg4[%c0_7, %c0_8] : memref<1x128xf32, #tpu.memory_space<vmem>>, vector<1x128xf32>
    %7 = vector.broadcast %6 : vector<1x128xf32> to vector<16x128xf32>
    %8 = arith.addf %5, %7 : vector<16x128xf32>
    %cst_9 = arith.constant 0.000000e+00 : f32
    %9 = vector.broadcast %cst_9 : f32 to vector<16x128xf32>
    %10 = arith.maximumf %8, %9 : vector<16x128xf32>
    %c0_10 = arith.constant 0 : index
    %c0_11 = arith.constant 0 : index
    %11 = vector.load %arg5[%c0_10, %c0_11] : memref<128x128xf32, #tpu.memory_space<vmem>>, vector<128x128xf32>
    %cst_12 = arith.constant dense<0.000000e+00> : vector<16x128xf32>
    %12 = tpu.matmul %10, %11, %cst_12 {dimension_numbers = #tpu.dot_dimension_numbers<[1], [0], [0], [1], [0, 0, 1, 1], [], []>} : vector<16x128xf32>, vector<128x128xf32>, vector<16x128xf32> -> vector<16x128xf32>
    %c0_13 = arith.constant 0 : index
    %c0_14 = arith.constant 0 : index
    %13 = vector.load %arg6[%c0_13, %c0_14] : memref<1x128xf32, #tpu.memory_space<vmem>>, vector<1x128xf32>
    %14 = vector.broadcast %13 : vector<1x128xf32> to vector<16x128xf32>
    %15 = arith.addf %12, %14 : vector<16x128xf32>
    %cst_15 = arith.constant 0.000000e+00 : f32
    %16 = vector.broadcast %cst_15 : f32 to vector<16x128xf32>
    %17 = arith.maximumf %15, %16 : vector<16x128xf32>
    %c0_16 = arith.constant 0 : index
    %c0_17 = arith.constant 0 : index
    %18 = vector.load %arg7[%c0_16, %c0_17] : memref<128x128xf32, #tpu.memory_space<vmem>>, vector<128x128xf32>
    %cst_18 = arith.constant dense<0.000000e+00> : vector<16x128xf32>
    %19 = tpu.matmul %17, %18, %cst_18 {dimension_numbers = #tpu.dot_dimension_numbers<[1], [0], [0], [1], [0, 0, 1, 1], [], []>} : vector<16x128xf32>, vector<128x128xf32>, vector<16x128xf32> -> vector<16x128xf32>
    %c0_19 = arith.constant 0 : index
    %c0_20 = arith.constant 0 : index
    %20 = vector.load %arg8[%c0_19, %c0_20] : memref<8x128xf32, #tpu.memory_space<vmem>>, vector<8x128xf32>
    %cst_21 = arith.constant dense<0.000000e+00> : vector<16x128xf32>
    %21 = tpu.matmul %3, %20, %cst_21 {dimension_numbers = #tpu.dot_dimension_numbers<[1], [0], [0], [1], [0, 0, 1, 1], [], []>} : vector<16x8xf32>, vector<8x128xf32>, vector<16x128xf32> -> vector<16x128xf32>
    %22 = arith.addf %19, %21 : vector<16x128xf32>
    %c0_22 = arith.constant 0 : index
    %c0_23 = arith.constant 0 : index
    %23 = vector.load %arg9[%c0_22, %c0_23] : memref<1x128xf32, #tpu.memory_space<vmem>>, vector<1x128xf32>
    %24 = vector.broadcast %23 : vector<1x128xf32> to vector<16x128xf32>
    %25 = arith.addf %22, %24 : vector<16x128xf32>
    %cst_24 = arith.constant 0.000000e+00 : f32
    %26 = vector.broadcast %cst_24 : f32 to vector<16x128xf32>
    %27 = arith.maximumf %25, %26 : vector<16x128xf32>
    %c0_25 = arith.constant 0 : index
    %c0_26 = arith.constant 0 : index
    %28 = vector.load %arg26[%c0_25, %c0_26] : memref<16x128xf32, #tpu.memory_space<vmem>>, vector<16x128xf32>
    tpu.vector_store %arg26[%c0_25, %c0_26], %27 {strides = array<i32>} : memref<16x128xf32, #tpu.memory_space<vmem>>, vector<16x128xf32>,
    %cst_27 = arith.constant 0.000000e+00 : f32
    %29 = vector.broadcast %cst_27 : f32 to vector<4x128xf32>
    %c0_28 = arith.constant 0 : index
    %c0_29 = arith.constant 0 : index
    %30 = vector.load %arg26[%c0_28, %c0_29] : memref<16x128xf32, #tpu.memory_space<vmem>>, vector<4x128xf32>
    %c0_30 = arith.constant 0 : index
    %c0_31 = arith.constant 0 : index
    %31 = vector.load %arg10[%c0_30, %c0_31] : memref<512x128xf32, #tpu.memory_space<vmem>>, vector<128x128xf32>
    %cst_32 = arith.constant dense<0.000000e+00> : vector<4x128xf32>
    %32 = tpu.matmul %30, %31, %cst_32 {dimension_numbers = #tpu.dot_dimension_numbers<[1], [0], [0], [1], [0, 0, 1, 1], [], []>} : vector<4x128xf32>, vector<128x128xf32>, vector<4x128xf32> -> vector<4x128xf32>
    %33 = arith.addf %29, %32 : vector<4x128xf32>
    %c4 = arith.constant 4 : index
    %c0_33 = arith.constant 0 : index
    %34 = vector.load %arg26[%c4, %c0_33] : memref<16x128xf32, #tpu.memory_space<vmem>>, vector<4x128xf32>
    %c128 = arith.constant 128 : index
    %c0_34 = arith.constant 0 : index
    %35 = vector.load %arg10[%c128, %c0_34] : memref<512x128xf32, #tpu.memory_space<vmem>>, vector<128x128xf32>
    %cst_35 = arith.constant dense<0.000000e+00> : vector<4x128xf32>
    %36 = tpu.matmul %34, %35, %cst_35 {dimension_numbers = #tpu.dot_dimension_numbers<[1], [0], [0], [1], [0, 0, 1, 1], [], []>} : vector<4x128xf32>, vector<128x128xf32>, vector<4x128xf32> -> vector<4x128xf32>
    %37 = arith.addf %33, %36 : vector<4x128xf32>
    %c8 = arith.constant 8 : index
    %c0_36 = arith.constant 0 : index
    %38 = vector.load %arg26[%c8, %c0_36] : memref<16x128xf32, #tpu.memory_space<vmem>>, vector<4x128xf32>
    %c256 = arith.constant 256 : index
    %c0_37 = arith.constant 0 : index
    %39 = vector.load %arg10[%c256, %c0_37] : memref<512x128xf32, #tpu.memory_space<vmem>>, vector<128x128xf32>
    %cst_38 = arith.constant dense<0.000000e+00> : vector<4x128xf32>
    %40 = tpu.matmul %38, %39, %cst_38 {dimension_numbers = #tpu.dot_dimension_numbers<[1], [0], [0], [1], [0, 0, 1, 1], [], []>} : vector<4x128xf32>, vector<128x128xf32>, vector<4x128xf32> -> vector<4x128xf32>
    %41 = arith.addf %37, %40 : vector<4x128xf32>
    %c12 = arith.constant 12 : index
    %c0_39 = arith.constant 0 : index
    %42 = vector.load %arg26[%c12, %c0_39] : memref<16x128xf32, #tpu.memory_space<vmem>>, vector<4x128xf32>
    %c384 = arith.constant 384 : index
    %c0_40 = arith.constant 0 : index
    %43 = vector.load %arg10[%c384, %c0_40] : memref<512x128xf32, #tpu.memory_space<vmem>>, vector<128x128xf32>
    %cst_41 = arith.constant dense<0.000000e+00> : vector<4x128xf32>
    %44 = tpu.matmul %42, %43, %cst_41 {dimension_numbers = #tpu.dot_dimension_numbers<[1], [0], [0], [1], [0, 0, 1, 1], [], []>} : vector<4x128xf32>, vector<128x128xf32>, vector<4x128xf32> -> vector<4x128xf32>
    %45 = arith.addf %41, %44 : vector<4x128xf32>
    %c0_42 = arith.constant 0 : index
    %c0_43 = arith.constant 0 : index
    %46 = vector.load %arg11[%c0_42, %c0_43] : memref<1x128xf32, #tpu.memory_space<vmem>>, vector<1x128xf32>
    %47 = vector.broadcast %46 : vector<1x128xf32> to vector<4x128xf32>
    %48 = arith.addf %45, %47 : vector<4x128xf32>
    %cst_44 = arith.constant 0.000000e+00 : f32
    %49 = vector.broadcast %cst_44 : f32 to vector<4x128xf32>
    %50 = arith.maximumf %48, %49 : vector<4x128xf32>
    %c0_45 = arith.constant 0 : index
    %c0_46 = arith.constant 0 : index
    %51 = vector.load %arg12[%c0_45, %c0_46] : memref<128x128xf32, #tpu.memory_space<vmem>>, vector<128x128xf32>
    %cst_47 = arith.constant dense<0.000000e+00> : vector<4x128xf32>
    %52 = tpu.matmul %50, %51, %cst_47 {dimension_numbers = #tpu.dot_dimension_numbers<[1], [0], [0], [1], [0, 0, 1, 1], [], []>} : vector<4x128xf32>, vector<128x128xf32>, vector<4x128xf32> -> vector<4x128xf32>
    %c0_48 = arith.constant 0 : index
    %c0_49 = arith.constant 0 : index
    %53 = vector.load %arg13[%c0_48, %c0_49] : memref<1x128xf32, #tpu.memory_space<vmem>>, vector<1x128xf32>
    %54 = vector.broadcast %53 : vector<1x128xf32> to vector<4x128xf32>
    %55 = arith.addf %52, %54 : vector<4x128xf32>
    %cst_50 = arith.constant 0.000000e+00 : f32
    %56 = vector.broadcast %cst_50 : f32 to vector<4x128xf32>
    %57 = arith.maximumf %55, %56 : vector<4x128xf32>
    %c0_51 = arith.constant 0 : index
    %c0_52 = arith.constant 0 : index
    %58 = vector.load %arg27[%c0_51, %c0_52] : memref<4x128xf32, #tpu.memory_space<vmem>>, vector<4x128xf32>
    tpu.vector_store %arg27[%c0_51, %c0_52], %57 {strides = array<i32>} : memref<4x128xf32, #tpu.memory_space<vmem>>, vector<4x128xf32>,
    %cst_53 = arith.constant 0.000000e+00 : f32
    %59 = vector.broadcast %cst_53 : f32 to vector<1x128xf32>
    %c0_54 = arith.constant 0 : index
    %c0_55 = arith.constant 0 : index
    %60 = vector.load %arg27[%c0_54, %c0_55] : memref<4x128xf32, #tpu.memory_space<vmem>>, vector<1x128xf32>
    %c0_56 = arith.constant 0 : index
    %c0_57 = arith.constant 0 : index
    %61 = vector.load %arg14[%c0_56, %c0_57] : memref<512x128xf32, #tpu.memory_space<vmem>>, vector<128x128xf32>
    %cst_58 = arith.constant dense<0.000000e+00> : vector<1x128xf32>
    %62 = tpu.matmul %60, %61, %cst_58 {dimension_numbers = #tpu.dot_dimension_numbers<[1], [0], [0], [1], [0, 0, 1, 1], [], []>} : vector<1x128xf32>, vector<128x128xf32>, vector<1x128xf32> -> vector<1x128xf32>
    %63 = arith.addf %59, %62 : vector<1x128xf32>
    %c1 = arith.constant 1 : index
    %c0_59 = arith.constant 0 : index
    %64 = vector.load %arg27[%c1, %c0_59] : memref<4x128xf32, #tpu.memory_space<vmem>>, vector<1x128xf32>
    %c128_60 = arith.constant 128 : index
    %c0_61 = arith.constant 0 : index
    %65 = vector.load %arg14[%c128_60, %c0_61] : memref<512x128xf32, #tpu.memory_space<vmem>>, vector<128x128xf32>
    %cst_62 = arith.constant dense<0.000000e+00> : vector<1x128xf32>
    %66 = tpu.matmul %64, %65, %cst_62 {dimension_numbers = #tpu.dot_dimension_numbers<[1], [0], [0], [1], [0, 0, 1, 1], [], []>} : vector<1x128xf32>, vector<128x128xf32>, vector<1x128xf32> -> vector<1x128xf32>
    %67 = arith.addf %63, %66 : vector<1x128xf32>
    %c2 = arith.constant 2 : index
    %c0_63 = arith.constant 0 : index
    %68 = vector.load %arg27[%c2, %c0_63] : memref<4x128xf32, #tpu.memory_space<vmem>>, vector<1x128xf32>
    %c256_64 = arith.constant 256 : index
    %c0_65 = arith.constant 0 : index
    %69 = vector.load %arg14[%c256_64, %c0_65] : memref<512x128xf32, #tpu.memory_space<vmem>>, vector<128x128xf32>
    %cst_66 = arith.constant dense<0.000000e+00> : vector<1x128xf32>
    %70 = tpu.matmul %68, %69, %cst_66 {dimension_numbers = #tpu.dot_dimension_numbers<[1], [0], [0], [1], [0, 0, 1, 1], [], []>} : vector<1x128xf32>, vector<128x128xf32>, vector<1x128xf32> -> vector<1x128xf32>
    %71 = arith.addf %67, %70 : vector<1x128xf32>
    %c3 = arith.constant 3 : index
    %c0_67 = arith.constant 0 : index
    %72 = vector.load %arg27[%c3, %c0_67] : memref<4x128xf32, #tpu.memory_space<vmem>>, vector<1x128xf32>
    %c384_68 = arith.constant 384 : index
    %c0_69 = arith.constant 0 : index
    %73 = vector.load %arg14[%c384_68, %c0_69] : memref<512x128xf32, #tpu.memory_space<vmem>>, vector<128x128xf32>
    %cst_70 = arith.constant dense<0.000000e+00> : vector<1x128xf32>
    %74 = tpu.matmul %72, %73, %cst_70 {dimension_numbers = #tpu.dot_dimension_numbers<[1], [0], [0], [1], [0, 0, 1, 1], [], []>} : vector<1x128xf32>, vector<128x128xf32>, vector<1x128xf32> -> vector<1x128xf32>
    %75 = arith.addf %71, %74 : vector<1x128xf32>
    %c0_71 = arith.constant 0 : index
    %c0_72 = arith.constant 0 : index
    %76 = vector.load %arg15[%c0_71, %c0_72] : memref<1x128xf32, #tpu.memory_space<vmem>>, vector<1x128xf32>
    %77 = arith.addf %75, %76 : vector<1x128xf32>
    %cst_73 = arith.constant 0.000000e+00 : f32
    %78 = vector.broadcast %cst_73 : f32 to vector<1x128xf32>
    %79 = arith.maximumf %77, %78 : vector<1x128xf32>
    %c0_74 = arith.constant 0 : index
    %c0_75 = arith.constant 0 : index
    %80 = vector.load %arg16[%c0_74, %c0_75] : memref<128x128xf32, #tpu.memory_space<vmem>>, vector<128x128xf32>
    %cst_76 = arith.constant dense<0.000000e+00> : vector<1x128xf32>
    %81 = tpu.matmul %79, %80, %cst_76 {dimension_numbers = #tpu.dot_dimension_numbers<[1], [0], [0], [1], [0, 0, 1, 1], [], []>} : vector<1x128xf32>, vector<128x128xf32>, vector<1x128xf32> -> vector<1x128xf32>
    %c0_77 = arith.constant 0 : index
    %c0_78 = arith.constant 0 : index
    %82 = vector.load %arg17[%c0_77, %c0_78] : memref<1x128xf32, #tpu.memory_space<vmem>>, vector<1x128xf32>
    %83 = arith.addf %81, %82 : vector<1x128xf32>
    %cst_79 = arith.constant 0.000000e+00 : f32
    %84 = vector.broadcast %cst_79 : f32 to vector<1x128xf32>
    %85 = arith.maximumf %83, %84 : vector<1x128xf32>
    %c0_80 = arith.constant 0 : index
    %c0_81 = arith.constant 0 : index
    %86 = vector.load %arg18[%c0_80, %c0_81] : memref<128x128xf32, #tpu.memory_space<vmem>>, vector<128x128xf32>
    %cst_82 = arith.constant dense<0.000000e+00> : vector<1x128xf32>
    %87 = tpu.matmul %85, %86, %cst_82 {dimension_numbers = #tpu.dot_dimension_numbers<[1], [0], [0], [1], [0, 0, 1, 1], [], []>} : vector<1x128xf32>, vector<128x128xf32>, vector<1x128xf32> -> vector<1x128xf32>
    %c0_83 = arith.constant 0 : index
    %c0_84 = arith.constant 0 : index
    %88 = vector.load %arg19[%c0_83, %c0_84] : memref<1x128xf32, #tpu.memory_space<vmem>>, vector<1x128xf32>
    %89 = arith.addf %87, %88 : vector<1x128xf32>
    %cst_85 = arith.constant 0.000000e+00 : f32
    %90 = vector.broadcast %cst_85 : f32 to vector<1x128xf32>
    %91 = arith.maximumf %89, %90 : vector<1x128xf32>
    %c0_86 = arith.constant 0 : index
    %c0_87 = arith.constant 0 : index
    %92 = vector.load %arg20[%c0_86, %c0_87] : memref<128x512xf32, #tpu.memory_space<vmem>>, vector<128x512xf32>
    %cst_88 = arith.constant dense<0.000000e+00> : vector<1x512xf32>
    %93 = tpu.matmul %91, %92, %cst_88 {dimension_numbers = #tpu.dot_dimension_numbers<[1], [0], [0], [1], [0, 0, 1, 1], [], []>} : vector<1x128xf32>, vector<128x512xf32>, vector<1x512xf32> -> vector<1x512xf32>
    %c0_89 = arith.constant 0 : index
    %c0_90 = arith.constant 0 : index
    %94 = vector.load %arg21[%c0_89, %c0_90] : memref<1x512xf32, #tpu.memory_space<vmem>>, vector<1x512xf32>
    %95 = arith.addf %93, %94 : vector<1x512xf32>
    %cst_91 = arith.constant 0.000000e+00 : f32
    %96 = vector.broadcast %cst_91 : f32 to vector<1x512xf32>
    %97 = arith.maximumf %95, %96 : vector<1x512xf32>
    %c0_92 = arith.constant 0 : index
    %c0_93 = arith.constant 0 : index
    %98 = vector.load %arg22[%c0_92, %c0_93] : memref<512x128xf32, #tpu.memory_space<vmem>>, vector<512x128xf32>
    %cst_94 = arith.constant dense<0.000000e+00> : vector<1x128xf32>
    %99 = tpu.matmul %97, %98, %cst_94 {dimension_numbers = #tpu.dot_dimension_numbers<[1], [0], [0], [1], [0, 0, 1, 1], [], []>} : vector<1x512xf32>, vector<512x128xf32>, vector<1x128xf32> -> vector<1x128xf32>
    %c0_95 = arith.constant 0 : index
    %c0_96 = arith.constant 0 : index
    %100 = vector.load %arg23[%c0_95, %c0_96] : memref<1x128xf32, #tpu.memory_space<vmem>>, vector<1x128xf32>
    %101 = arith.addf %99, %100 : vector<1x128xf32>
    %c0_97 = arith.constant 0 : index
    %c0_98 = arith.constant 0 : index
    %c0_99 = arith.constant 0 : index
    %102 = vector.load %arg24[%c0_97, %c0_98, %c0_99] : memref<1x1x128xf32, #tpu.memory_space<vmem>>, vector<1x1x128xf32>
    %103 = vector.shape_cast %102 : vector<1x1x128xf32> to vector<1x128xf32>
    %104 = vector.shape_cast %101 : vector<1x128xf32> to vector<1x1x128xf32>
    tpu.vector_store %arg24[%c0_97, %c0_98, %c0_99], %104 {strides = array<i32>} : memref<1x1x128xf32, #tpu.memory_space<vmem>>, vector<1x1x128xf32>,
    %c0_100 = arith.constant 0 : index
    %c0_101 = arith.constant 0 : index
    %c0_102 = arith.constant 0 : index
    %105 = vector.load %arg25[%c0_100, %c0_101, %c0_102] : memref<1x1x128xf32, #tpu.memory_space<vmem>>, vector<1x1x128xf32>
    %106 = vector.shape_cast %105 : vector<1x1x128xf32> to vector<1x128xf32>
    %107 = vector.shape_cast %85 : vector<1x128xf32> to vector<1x1x128xf32>
    tpu.vector_store %arg25[%c0_100, %c0_101, %c0_102], %107 {strides = array<i32>} : memref<1x1x128xf32, #tpu.memory_space<vmem>>, vector<1x1x128xf32>,
    return
  }
  func.func @transform_0(%arg0: i32) -> (i32, i32, i32) {
    %c0_i32 = arith.constant 0 : i32
    %c0_i32_0 = arith.constant 0 : i32
    %c0_i32_1 = arith.constant 0 : i32
    return %arg0, %c0_i32, %c0_i32_0 : i32, i32, i32
  }
  func.func @transform_1(%arg0: i32) -> (i32, i32, i32) {
    %c0_i32 = arith.constant 0 : i32
    %c0_i32_0 = arith.constant 0 : i32
    %c0_i32_1 = arith.constant 0 : i32
    return %arg0, %c0_i32, %c0_i32_0 : i32, i32, i32
  }
  func.func @transform_2(%arg0: i32) -> (i32, i32) {
    %c0_i32 = arith.constant 0 : i32
    %c0_i32_0 = arith.constant 0 : i32
    %c0_i32_1 = arith.constant 0 : i32
    return %c0_i32, %c0_i32_0 : i32, i32
  }
  func.func @transform_3(%arg0: i32) -> (i32, i32) {
    %c0_i32 = arith.constant 0 : i32
    %c0_i32_0 = arith.constant 0 : i32
    %c0_i32_1 = arith.constant 0 : i32
    return %c0_i32, %c0_i32_0 : i32, i32
  }
  func.func @transform_4(%arg0: i32) -> (i32, i32) {
    %c0_i32 = arith.constant 0 : i32
    %c0_i32_0 = arith.constant 0 : i32
    %c0_i32_1 = arith.constant 0 : i32
    return %c0_i32, %c0_i32_0 : i32, i32
  }
  func.func @transform_5(%arg0: i32) -> (i32, i32) {
    %c0_i32 = arith.constant 0 : i32
    %c0_i32_0 = arith.constant 0 : i32
    %c0_i32_1 = arith.constant 0 : i32
    return %c0_i32, %c0_i32_0 : i32, i32
  }
  func.func @transform_6(%arg0: i32) -> (i32, i32) {
    %c0_i32 = arith.constant 0 : i32
    %c0_i32_0 = arith.constant 0 : i32
    %c0_i32_1 = arith.constant 0 : i32
    return %c0_i32, %c0_i32_0 : i32, i32
  }
  func.func @transform_7(%arg0: i32) -> (i32, i32) {
    %c0_i32 = arith.constant 0 : i32
    %c0_i32_0 = arith.constant 0 : i32
    %c0_i32_1 = arith.constant 0 : i32
    return %c0_i32, %c0_i32_0 : i32, i32
  }
  func.func @transform_8(%arg0: i32) -> (i32, i32) {
    %c0_i32 = arith.constant 0 : i32
    %c0_i32_0 = arith.constant 0 : i32
    %c0_i32_1 = arith.constant 0 : i32
    return %c0_i32, %c0_i32_0 : i32, i32
  }
  func.func @transform_9(%arg0: i32) -> (i32, i32) {
    %c0_i32 = arith.constant 0 : i32
    %c0_i32_0 = arith.constant 0 : i32
    %c0_i32_1 = arith.constant 0 : i32
    return %c0_i32, %c0_i32_0 : i32, i32
  }
  func.func @transform_10(%arg0: i32) -> (i32, i32) {
    %c0_i32 = arith.constant 0 : i32
    %c0_i32_0 = arith.constant 0 : i32
    %c0_i32_1 = arith.constant 0 : i32
    return %c0_i32, %c0_i32_0 : i32, i32
  }
  func.func @transform_11(%arg0: i32) -> (i32, i32) {
    %c0_i32 = arith.constant 0 : i32
    %c0_i32_0 = arith.constant 0 : i32
    %c0_i32_1 = arith.constant 0 : i32
    return %c0_i32, %c0_i32_0 : i32, i32
  }
  func.func @transform_12(%arg0: i32) -> (i32, i32) {
    %c0_i32 = arith.constant 0 : i32
    %c0_i32_0 = arith.constant 0 : i32
    %c0_i32_1 = arith.constant 0 : i32
    return %c0_i32, %c0_i32_0 : i32, i32
  }
  func.func @transform_13(%arg0: i32) -> (i32, i32) {
    %c0_i32 = arith.constant 0 : i32
    %c0_i32_0 = arith.constant 0 : i32
    %c0_i32_1 = arith.constant 0 : i32
    return %c0_i32, %c0_i32_0 : i32, i32
  }
  func.func @transform_14(%arg0: i32) -> (i32, i32) {
    %c0_i32 = arith.constant 0 : i32
    %c0_i32_0 = arith.constant 0 : i32
    %c0_i32_1 = arith.constant 0 : i32
    return %c0_i32, %c0_i32_0 : i32, i32
  }
  func.func @transform_15(%arg0: i32) -> (i32, i32) {
    %c0_i32 = arith.constant 0 : i32
    %c0_i32_0 = arith.constant 0 : i32
    %c0_i32_1 = arith.constant 0 : i32
    return %c0_i32, %c0_i32_0 : i32, i32
  }
  func.func @transform_16(%arg0: i32) -> (i32, i32) {
    %c0_i32 = arith.constant 0 : i32
    %c0_i32_0 = arith.constant 0 : i32
    %c0_i32_1 = arith.constant 0 : i32
    return %c0_i32, %c0_i32_0 : i32, i32
  }
  func.func @transform_17(%arg0: i32) -> (i32, i32) {
    %c0_i32 = arith.constant 0 : i32
    %c0_i32_0 = arith.constant 0 : i32
    %c0_i32_1 = arith.constant 0 : i32
    return %c0_i32, %c0_i32_0 : i32, i32
  }
  func.func @transform_18(%arg0: i32) -> (i32, i32) {
    %c0_i32 = arith.constant 0 : i32
    %c0_i32_0 = arith.constant 0 : i32
    %c0_i32_1 = arith.constant 0 : i32
    return %c0_i32, %c0_i32_0 : i32, i32
  }
  func.func @transform_19(%arg0: i32) -> (i32, i32) {
    %c0_i32 = arith.constant 0 : i32
    %c0_i32_0 = arith.constant 0 : i32
    %c0_i32_1 = arith.constant 0 : i32
    return %c0_i32, %c0_i32_0 : i32, i32
  }
  func.func @transform_20(%arg0: i32) -> (i32, i32) {
    %c0_i32 = arith.constant 0 : i32
    %c0_i32_0 = arith.constant 0 : i32
    %c0_i32_1 = arith.constant 0 : i32
    return %c0_i32, %c0_i32_0 : i32, i32
  }
  func.func @transform_21(%arg0: i32) -> (i32, i32) {
    %c0_i32 = arith.constant 0 : i32
    %c0_i32_0 = arith.constant 0 : i32
    %c0_i32_1 = arith.constant 0 : i32
    return %c0_i32, %c0_i32_0 : i32, i32
  }
  func.func @transform_22(%arg0: i32) -> (i32, i32) {
    %c0_i32 = arith.constant 0 : i32
    %c0_i32_0 = arith.constant 0 : i32
    %c0_i32_1 = arith.constant 0 : i32
    return %c0_i32, %c0_i32_0 : i32, i32
  }
  func.func @transform_23(%arg0: i32) -> (i32, i32, i32) {
    %c0_i32 = arith.constant 0 : i32
    %c0_i32_0 = arith.constant 0 : i32
    %c0_i32_1 = arith.constant 0 : i32
    return %arg0, %c0_i32, %c0_i32_0 : i32, i32, i32
  }
  func.func @transform_24(%arg0: i32) -> (i32, i32, i32) {
    %c0_i32 = arith.constant 0 : i32
    %c0_i32_0 = arith.constant 0 : i32
    %c0_i32_1 = arith.constant 0 : i32
    return %arg0, %c0_i32, %c0_i32_0 : i32, i32, i32
  }
}

</mosaic_0001>

<llo_original>
// kernel: eq.1
$region0: #{eq.1}
  %s0 = inlined_call_operand.vmem [shape: s32[2,4,4], index: 0, kind: input, shape index: {}]
  %s1 = inlined_call_operand.vmem [shape: s32[2,16], index: 1, kind: output, shape index: {}]
  $region1: #{eq.1} parent=0
    #allocation0 [shape = 'u8[4096]{0}', space=vmem, size = 0x1000, scoped, tag = 'scoped mem for output reshape']
    #allocation1 [shape = 'u8[8192]{0}', space=vmem, size = 0x2000, scoped, tag = 'scoped mem for input reshape']
    %s3 = ssub.s32 16, 1
    %s4 = scalar_lea.vmem %s0, 4
    %v5 = vld [vmem:[%s4] sm:%s3]
    %s6 = scalar_lea.vmem [#allocation1], 8
    %7 = vst [vmem:[%s6] sm:%s3] %v5
    %v8 = vld [vmem:[%s0] sm:%s3]
    %9 = vst [vmem:[#allocation1] sm:%s3] %v8
    %s10 = smov 3
    %v11 = vld [vmem:[#allocation1] ss:$8 sm:%s10]
    %vm12 = vcmask 31744
    %13 = vst.msk [vmem:[#allocation0] sm:$0x3] %vm12, %v11
    %s14 = scalar_lea.vmem [#allocation1], 3
    %s15 = smov 3
    %v16 = vld [vmem:[%s14] ss:$8 sm:%s15]
    %17 = vrot.lane.b32.xlu0 %v16, 12
    %v18 = vpop.permute.xlu0 %17
    %vm19 = vcmask 130144
    %20 = vst.msk [vmem:[#allocation0] sm:$0x3] %vm19, %v18
    %s21 = scalar_lea.vmem [#allocation1], 2
    %s22 = smov 3
    %v23 = vld [vmem:[%s21] ss:$8 sm:%s22]
    %24 = vrot.lane.b32.xlu0 %v23, 8
    %v25 = vpop.permute.xlu0 %24
    %vm26 = vcmask 97344
    %27 = vst.msk [vmem:[#allocation0] sm:$0x3] %vm26, %v25
    %s28 = scalar_lea.vmem [#allocation1], 1
    %s29 = smov 3
    %v30 = vld [vmem:[%s28] ss:$8 sm:%s29]
    %31 = vrot.lane.b32.xlu0 %v30, 4
    %v32 = vpop.permute.xlu0 %31
    %vm33 = vcmask 64544
    %34 = vst.msk [vmem:[#allocation0] sm:$0x3] %vm33, %v32
    %s36 = ssub.s32 4, 1
    %v37 = vld [vmem:[#allocation0] sm:%s36]
    %s39 = ssub.s32 4, 1
    %40 = vst [vmem:[%s1] sm:%s39] %v37

// kernel: forward.1
$region0: #{forward.1}
  #allocation0 [shape = 'u32[]', space=smem, size = 0x4, offset = 0x4, fixed_abs, tag = 'smem constant byte address 0x4 - core index']
  #allocation1 [shape = 'u32[72,128]{1,0:T(1,128)}', space=vmem, size = 0x9000, scoped, tag = 'internal scratch']
  #allocation2 [shape = 'f32[16,128]{1,0:T(8,128)}', space=vmem, size = 0x2000, scoped, tag = 'scratch operand']
  #allocation3 [shape = 'f32[4,128]{1,0:T(4,128)}', space=vmem, size = 0x800, scoped, tag = 'scratch operand']
  %s0 = inlined_call_operand.vmem [shape: f32[2,16,16], index: 0, kind: input, shape index: {}]
  %s1 = inlined_call_operand.vmem [shape: f32[2,16,8], index: 1, kind: input, shape index: {}]
  %s2 = inlined_call_operand.hbm [shape: f32[16,128], index: 2, kind: input, shape index: {}]
  %s3 = inlined_call_operand.vmem [shape: f32[1,128], index: 3, kind: input, shape index: {}]
  %s4 = inlined_call_operand.vmem [shape: f32[128,128], index: 4, kind: input, shape index: {}]
  %s5 = inlined_call_operand.vmem [shape: f32[1,128], index: 5, kind: input, shape index: {}]
  %s6 = inlined_call_operand.vmem [shape: f32[128,128], index: 6, kind: input, shape index: {}]
  %s7 = inlined_call_operand.hbm [shape: f32[8,128], index: 7, kind: input, shape index: {}]
  %s8 = inlined_call_operand.vmem [shape: f32[1,128], index: 8, kind: input, shape index: {}]
  %s9 = inlined_call_operand.hbm [shape: f32[512,128], index: 9, kind: input, shape index: {}]
  %s10 = inlined_call_operand.vmem [shape: f32[1,128], index: 10, kind: input, shape index: {}]
  %s11 = inlined_call_operand.vmem [shape: f32[128,128], index: 11, kind: input, shape index: {}]
  %s12 = inlined_call_operand.vmem [shape: f32[1,128], index: 12, kind: input, shape index: {}]
  %s13 = inlined_call_operand.hbm [shape: f32[512,128], index: 13, kind: input, shape index: {}]
  %s14 = inlined_call_operand.vmem [shape: f32[1,128], index: 14, kind: input, shape index: {}]
  %s15 = inlined_call_operand.hbm [shape: f32[128,128], index: 15, kind: input, shape index: {}]
  %s16 = inlined_call_operand.vmem [shape: f32[1,128], index: 16, kind: input, shape index: {}]
  %s17 = inlined_call_operand.hbm [shape: f32[128,128], index: 17, kind: input, shape index: {}]
  %s18 = inlined_call_operand.vmem [shape: f32[1,128], index: 18, kind: input, shape index: {}]
  %s19 = inlined_call_operand.hbm [shape: f32[128,512], index: 19, kind: input, shape index: {}]
  %s20 = inlined_call_operand.vmem [shape: f32[1,512], index: 20, kind: input, shape index: {}]
  %s21 = inlined_call_operand.hbm [shape: f32[512,128], index: 21, kind: input, shape index: {}]
  %s22 = inlined_call_operand.vmem [shape: f32[1,128], index: 22, kind: input, shape index: {}]
  %s23 = inlined_call_operand.hbm [shape: f32[2,1,128], index: 23, kind: output, shape index: {0}]
  %s24 = inlined_call_operand.hbm [shape: f32[2,1,128], index: 24, kind: output, shape index: {1}]
  %25 = xla_tuple %s23, %s24
  %s26 = sld [smem:[#allocation0]]
  $region165: #{forward.1} parent=0
    _
  %s28 = ssub.s32 1, %s26
  %s29 = scalar_select 0, %s28, %s26
  $region1: #{forward.1} parent=0
    #allocation4 [shape = 'u8[8192]{0}', space=vmem, size = 0x2000, scoped, tag = 'input window, operand 2, single buffered']
    #allocation5 [shape = 's32[2]{0}', space=sflag, size = 0x8, scoped, tag = 'scoped memory for forward.1']
    #allocation6 [shape = 's32[2]{0}', space=sflag, size = 0x8, scoped, tag = 'scoped memory for forward.1']
    #allocation7 [shape = 'u8[4096]{0}', space=vmem, size = 0x1000, scoped, tag = 'input window, operand 7, single buffered']
    #allocation8 [shape = 's32[1]{0}', space=sflag, size = 0x4, scoped, tag = 'scoped memory for forward.1']
    #allocation9 [shape = 'u8[262144]{0}', space=vmem, size = 0x40000, scoped, tag = 'input window, operand 9, single buffered']
    #allocation10 [shape = 'u8[262144]{0}', space=vmem, size = 0x40000, scoped, tag = 'input window, operand 13, single buffered']
    #allocation11 [shape = 's32[1]{0}', space=sflag, size = 0x4, scoped, tag = 'scoped memory for forward.1']
    #allocation12 [shape = 'u8[65536]{0}', space=vmem, size = 0x10000, scoped, tag = 'input window, operand 15, single buffered']
    #allocation13 [shape = 'u8[65536]{0}', space=vmem, size = 0x10000, scoped, tag = 'input window, operand 17, single buffered']
    #allocation14 [shape = 's32[1]{0}', space=sflag, size = 0x4, scoped, tag = 'scoped memory for forward.1']
    #allocation15 [shape = 'u8[262144]{0}', space=vmem, size = 0x40000, scoped, tag = 'input window, operand 19, single buffered']
    #allocation16 [shape = 'u8[262144]{0}', space=vmem, size = 0x40000, scoped, tag = 'input window, operand 21, single buffered']
    #allocation17 [shape = 's32[1]{0}', space=sflag, size = 0x4, scoped, tag = 'scoped memory for forward.1']
    #allocation18 [shape = 'u8[1024]{0}', space=vmem, size = 0x400, scoped, tag = 'output window, operand 0']
    #allocation19 [shape = 'u8[1024]{0}', space=vmem, size = 0x400, scoped, tag = 'output window, operand 1']
    #allocation20 [shape = 's32[2]{0}', space=sflag, size = 0x8, scoped, tag = 'scoped memory for forward.1']
    %30 = vsyncpa [#allocation5], 0
    %31 = vsyncpa [#allocation8], 0
    %32 = vsyncpa [#allocation11], 0
    %33 = vsyncpa [#allocation14], 0
    %34 = vsyncpa [#allocation17], 0
    %35 = vsyncpa [#allocation6], 0
    %s36 = scalar_lea.sflag [#allocation6], 1
    %37 = vsyncpa %s36, 0
    %38 = vsyncpa [#allocation20], 0
    %s39 = scalar_lea.sflag [#allocation20], 1
    %40 = vsyncpa %s39, 0
    loop: start=0, step=1, limit=4
    $region2: #{forward.1} parent=1 // loop_pre_header
      _
    $region3: #{forward.1} parent=1 // loop_header
      %s42 = sphi 0, %s46
      %p43 = scmp.ge.s32.totalorder %s42, 4
      %s52 = sphi 0, %s54
      %s55 = sphi 0, %s52
      %s56 = sphi 0, %s55
      %s72 = sphi 0, %s56
      %s78 = sphi 0, %s80
      %s81 = sphi 0, %s78
      %s82 = sphi 0, %s81
      %s98 = sphi 0, %s82
      %s102 = sphi 0, %s102
      %s104 = sphi 0, %s102
      %s105 = sphi 0, %s104
      %s119 = sphi 0, %s105
      %s123 = sphi 0, %s123
      %s125 = sphi 0, %s123
      %s126 = sphi 0, %s125
      %s140 = sphi 0, %s126
      %s144 = sphi 0, %s144
      %s146 = sphi 0, %s144
      %s147 = sphi 0, %s146
      %s161 = sphi 0, %s147
      %s165 = sphi 0, %s165
      %s167 = sphi 0, %s165
      %s168 = sphi 0, %s167
      %s182 = sphi 0, %s168
      %s186 = sphi 0, %s186
      %s188 = sphi 0, %s186
      %s189 = sphi 0, %s188
      %s203 = sphi 0, %s189
      %s207 = sphi 0, %s207
      %s209 = sphi 0, %s207
      %s210 = sphi 0, %s209
      %s224 = sphi 0, %s210
      %s228 = sphi 0, %s228
      %s230 = sphi 0, %s228
      %s231 = sphi 0, %s230
      %s245 = sphi 0, %s231
      %s249 = sphi 0, %s249
      %s251 = sphi 0, %s249
      %s252 = sphi 0, %s251
      %s266 = sphi 0, %s252
      %s270 = sphi 0, %s270
      %s272 = sphi 0, %s270
      %s273 = sphi 0, %s272
      %s287 = sphi 0, %s273
      %s291 = sphi 0, %s291
      %s293 = sphi 0, %s291
      %s294 = sphi 0, %s293
      %s308 = sphi 0, %s294
      %s312 = sphi 0, %s312
      %s314 = sphi 0, %s312
      %s315 = sphi 0, %s314
      %s329 = sphi 0, %s315
      %s333 = sphi 0, %s333
      %s335 = sphi 0, %s333
      %s336 = sphi 0, %s335
      %s350 = sphi 0, %s336
      %s354 = sphi 0, %s354
      %s356 = sphi 0, %s354
      %s357 = sphi 0, %s356
      %s371 = sphi 0, %s357
      %s375 = sphi 0, %s375
      %s377 = sphi 0, %s375
      %s378 = sphi 0, %s377
      %s392 = sphi 0, %s378
      %s396 = sphi 0, %s396
      %s398 = sphi 0, %s396
      %s399 = sphi 0, %s398
      %s413 = sphi 0, %s399
      %s417 = sphi 0, %s417
      %s419 = sphi 0, %s417
      %s420 = sphi 0, %s419
      %s434 = sphi 0, %s420
      %s438 = sphi 0, %s438
      %s440 = sphi 0, %s438
      %s441 = sphi 0, %s440
      %s455 = sphi 0, %s441
      %s459 = sphi 0, %s459
      %s461 = sphi 0, %s459
      %s462 = sphi 0, %s461
      %s476 = sphi 0, %s462
      %s480 = sphi 0, %s480
      %s482 = sphi 0, %s480
      %s483 = sphi 0, %s482
      %s497 = sphi 0, %s483
      %s501 = sphi 0, %s501
      %s503 = sphi 0, %s501
      %s504 = sphi 0, %s503
      %s518 = sphi 0, %s504
      %s522 = sphi 0, %s522
      %s524 = sphi 0, %s522
      %s525 = sphi 0, %s524
      %s539 = sphi 0, %s525
      %s545 = sphi 0, %s547
      %s548 = sphi 0, %s545
      %s549 = sphi 0, %s548
      %s565 = sphi 0, %s549
      %s571 = sphi 0, %s573
      %s574 = sphi 0, %s571
      %s575 = sphi 0, %s574
      %s591 = sphi 0, %s575
    $region4: #{forward.1} parent=1 // loop_header_branch
      %45 = sbr.rel (%p43) target = $region8
    $region5: #{forward.1} parent=1 // loop_body
      %s47 = ssub.s32 %s42, 1
      %s48 = ssub.s32 %s42, 2
      %s49 = sadd.s32 %s42, 1
      %s50 = ssub.s32 %s42, %s49
      %p51 = scmp.eq.s32.totalorder %s50, 0
      %s53 = sadd.s32 %s52, 1
      %s54 = scalar_select %p51, %s52, %s53
      %p57 = pneg %p51
      %p58 = scmp.eq.s32.totalorder %s42, 1
      %p59 = por %p57, %p58
      %p60 = scmp.ne.s32.totalorder %s52, %s55
      %p61 = scmp.eq.s32.totalorder %s42, 0
      %p62 = por %p60, %p61
      %p63 = scmp.ne.s32.totalorder %s52, %s55
      %p64 = scmp.eq.s32.totalorder %s47, 1
      %p65 = por %p63, %p64
      %p66 = scmp.ne.s32.totalorder %s55, %s56
      %p67 = scmp.eq.s32.totalorder %s47, 0
      %p68 = por %p66, %p67
      %p69 = scmp.ne.s32.totalorder %s55, %s56
      %p70 = scmp.eq.s32.totalorder %s48, 1
      %p71 = por %p69, %p70
      %p73 = scmp.ne.s32.totalorder %s56, %s72
      %p74 = scmp.eq.s32.totalorder %s48, 0
      %p75 = por %p73, %p74
      %s76 = ssub.s32 %s42, %s49
      %p77 = scmp.eq.s32.totalorder %s76, 0
      %s79 = sadd.s32 %s78, 1
      %s80 = scalar_select %p77, %s78, %s79
      %p83 = pneg %p77
      %p84 = scmp.eq.s32.totalorder %s42, 1
      %p85 = por %p83, %p84
      %p86 = scmp.ne.s32.totalorder %s78, %s81
      %p87 = scmp.eq.s32.totalorder %s42, 0
      %p88 = por %p86, %p87
      %p89 = scmp.ne.s32.totalorder %s78, %s81
      %p90 = scmp.eq.s32.totalorder %s47, 1
      %p91 = por %p89, %p90
      %p92 = scmp.ne.s32.totalorder %s81, %s82
      %p93 = scmp.eq.s32.totalorder %s47, 0
      %p94 = por %p92, %p93
      %p95 = scmp.ne.s32.totalorder %s81, %s82
      %p96 = scmp.eq.s32.totalorder %s48, 1
      %p97 = por %p95, %p96
      %p99 = scmp.ne.s32.totalorder %s82, %s98
      %p100 = scmp.eq.s32.totalorder %s48, 0
      %p101 = por %p99, %p100
      %s103 = sadd.s32 %s102, 1
      %p106 = scmp.eq.s32.totalorder %s42, 1
      %p107 = scmp.ne.s32.totalorder %s102, %s104
      %p108 = scmp.eq.s32.totalorder %s42, 0
      %p109 = por %p107, %p108
      %p110 = scmp.ne.s32.totalorder %s102, %s104
      %p111 = scmp.eq.s32.totalorder %s47, 1
      %p112 = por %p110, %p111
      %p113 = scmp.ne.s32.totalorder %s104, %s105
      %p114 = scmp.eq.s32.totalorder %s47, 0
      %p115 = por %p113, %p114
      %p116 = scmp.ne.s32.totalorder %s104, %s105
      %p117 = scmp.eq.s32.totalorder %s48, 1
      %p118 = por %p116, %p117
      %p120 = scmp.ne.s32.totalorder %s105, %s119
      %p121 = scmp.eq.s32.totalorder %s48, 0
      %p122 = por %p120, %p121
      %s124 = sadd.s32 %s123, 1
      %p127 = scmp.eq.s32.totalorder %s42, 1
      %p128 = scmp.ne.s32.totalorder %s123, %s125
      %p129 = scmp.eq.s32.totalorder %s42, 0
      %p130 = por %p128, %p129
      %p131 = scmp.ne.s32.totalorder %s123, %s125
      %p132 = scmp.eq.s32.totalorder %s47, 1
      %p133 = por %p131, %p132
      %p134 = scmp.ne.s32.totalorder %s125, %s126
      %p135 = scmp.eq.s32.totalorder %s47, 0
      %p136 = por %p134, %p135
      %p137 = scmp.ne.s32.totalorder %s125, %s126
      %p138 = scmp.eq.s32.totalorder %s48, 1
      %p139 = por %p137, %p138
      %p141 = scmp.ne.s32.totalorder %s126, %s140
      %p142 = scmp.eq.s32.totalorder %s48, 0
      %p143 = por %p141, %p142
      %s145 = sadd.s32 %s144, 1
      %p148 = scmp.eq.s32.totalorder %s42, 1
      %p149 = scmp.ne.s32.totalorder %s144, %s146
      %p150 = scmp.eq.s32.totalorder %s42, 0
      %p151 = por %p149, %p150
      %p152 = scmp.ne.s32.totalorder %s144, %s146
      %p153 = scmp.eq.s32.totalorder %s47, 1
      %p154 = por %p152, %p153
      %p155 = scmp.ne.s32.totalorder %s146, %s147
      %p156 = scmp.eq.s32.totalorder %s47, 0
      %p157 = por %p155, %p156
      %p158 = scmp.ne.s32.totalorder %s146, %s147
      %p159 = scmp.eq.s32.totalorder %s48, 1
      %p160 = por %p158, %p159
      %p162 = scmp.ne.s32.totalorder %s147, %s161
      %p163 = scmp.eq.s32.totalorder %s48, 0
      %p164 = por %p162, %p163
      %s166 = sadd.s32 %s165, 1
      %p169 = scmp.eq.s32.totalorder %s42, 1
      %p170 = scmp.ne.s32.totalorder %s165, %s167
      %p171 = scmp.eq.s32.totalorder %s42, 0
      %p172 = por %p170, %p171
      %p173 = scmp.ne.s32.totalorder %s165, %s167
      %p174 = scmp.eq.s32.totalorder %s47, 1
      %p175 = por %p173, %p174
      %p176 = scmp.ne.s32.totalorder %s167, %s168
      %p177 = scmp.eq.s32.totalorder %s47, 0
      %p178 = por %p176, %p177
      %p179 = scmp.ne.s32.totalorder %s167, %s168
      %p180 = scmp.eq.s32.totalorder %s48, 1
      %p181 = por %p179, %p180
      %p183 = scmp.ne.s32.totalorder %s168, %s182
      %p184 = scmp.eq.s32.totalorder %s48, 0
      %p185 = por %p183, %p184
      %s187 = sadd.s32 %s186, 1
      %p190 = scmp.eq.s32.totalorder %s42, 1
      %p191 = scmp.ne.s32.totalorder %s186, %s188
      %p192 = scmp.eq.s32.totalorder %s42, 0
      %p193 = por %p191, %p192
      %p194 = scmp.ne.s32.totalorder %s186, %s188
      %p195 = scmp.eq.s32.totalorder %s47, 1
      %p196 = por %p194, %p195
      %p197 = scmp.ne.s32.totalorder %s188, %s189
      %p198 = scmp.eq.s32.totalorder %s47, 0
      %p199 = por %p197, %p198
      %p200 = scmp.ne.s32.totalorder %s188, %s189
      %p201 = scmp.eq.s32.totalorder %s48, 1
      %p202 = por %p200, %p201
      %p204 = scmp.ne.s32.totalorder %s189, %s203
      %p205 = scmp.eq.s32.totalorder %s48, 0
      %p206 = por %p204, %p205
      %s208 = sadd.s32 %s207, 1
      %p211 = scmp.eq.s32.totalorder %s42, 1
      %p212 = scmp.ne.s32.totalorder %s207, %s209
      %p213 = scmp.eq.s32.totalorder %s42, 0
      %p214 = por %p212, %p213
      %p215 = scmp.ne.s32.totalorder %s207, %s209
      %p216 = scmp.eq.s32.totalorder %s47, 1
      %p217 = por %p215, %p216
      %p218 = scmp.ne.s32.totalorder %s209, %s210
      %p219 = scmp.eq.s32.totalorder %s47, 0
      %p220 = por %p218, %p219
      %p221 = scmp.ne.s32.totalorder %s209, %s210
      %p222 = scmp.eq.s32.totalorder %s48, 1
      %p223 = por %p221, %p222
      %p225 = scmp.ne.s32.totalorder %s210, %s224
      %p226 = scmp.eq.s32.totalorder %s48, 0
      %p227 = por %p225, %p226
      %s229 = sadd.s32 %s228, 1
      %p232 = scmp.eq.s32.totalorder %s42, 1
      %p233 = scmp.ne.s32.totalorder %s228, %s230
      %p234 = scmp.eq.s32.totalorder %s42, 0
      %p235 = por %p233, %p234
      %p236 = scmp.ne.s32.totalorder %s228, %s230
      %p237 = scmp.eq.s32.totalorder %s47, 1
      %p238 = por %p236, %p237
      %p239 = scmp.ne.s32.totalorder %s230, %s231
      %p240 = scmp.eq.s32.totalorder %s47, 0
      %p241 = por %p239, %p240
      %p242 = scmp.ne.s32.totalorder %s230, %s231
      %p243 = scmp.eq.s32.totalorder %s48, 1
      %p244 = por %p242, %p243
      %p246 = scmp.ne.s32.totalorder %s231, %s245
      %p247 = scmp.eq.s32.totalorder %s48, 0
      %p248 = por %p246, %p247
      %s250 = sadd.s32 %s249, 1
      %p253 = scmp.eq.s32.totalorder %s42, 1
      %p254 = scmp.ne.s32.totalorder %s249, %s251
      %p255 = scmp.eq.s32.totalorder %s42, 0
      %p256 = por %p254, %p255
      %p257 = scmp.ne.s32.totalorder %s249, %s251
      %p258 = scmp.eq.s32.totalorder %s47, 1
      %p259 = por %p257, %p258
      %p260 = scmp.ne.s32.totalorder %s251, %s252
      %p261 = scmp.eq.s32.totalorder %s47, 0
      %p262 = por %p260, %p261
      %p263 = scmp.ne.s32.totalorder %s251, %s252
      %p264 = scmp.eq.s32.totalorder %s48, 1
      %p265 = por %p263, %p264
      %p267 = scmp.ne.s32.totalorder %s252, %s266
      %p268 = scmp.eq.s32.totalorder %s48, 0
      %p269 = por %p267, %p268
      %s271 = sadd.s32 %s270, 1
      %p274 = scmp.eq.s32.totalorder %s42, 1
      %p275 = scmp.ne.s32.totalorder %s270, %s272
      %p276 = scmp.eq.s32.totalorder %s42, 0
      %p277 = por %p275, %p276
      %p278 = scmp.ne.s32.totalorder %s270, %s272
      %p279 = scmp.eq.s32.totalorder %s47, 1
      %p280 = por %p278, %p279
      %p281 = scmp.ne.s32.totalorder %s272, %s273
      %p282 = scmp.eq.s32.totalorder %s47, 0
      %p283 = por %p281, %p282
      %p284 = scmp.ne.s32.totalorder %s272, %s273
      %p285 = scmp.eq.s32.totalorder %s48, 1
      %p286 = por %p284, %p285
      %p288 = scmp.ne.s32.totalorder %s273, %s287
      %p289 = scmp.eq.s32.totalorder %s48, 0
      %p290 = por %p288, %p289
      %s292 = sadd.s32 %s291, 1
      %p295 = scmp.eq.s32.totalorder %s42, 1
      %p296 = scmp.ne.s32.totalorder %s291, %s293
      %p297 = scmp.eq.s32.totalorder %s42, 0
      %p298 = por %p296, %p297
      %p299 = scmp.ne.s32.totalorder %s291, %s293
      %p300 = scmp.eq.s32.totalorder %s47, 1
      %p301 = por %p299, %p300
      %p302 = scmp.ne.s32.totalorder %s293, %s294
      %p303 = scmp.eq.s32.totalorder %s47, 0
      %p304 = por %p302, %p303
      %p305 = scmp.ne.s32.totalorder %s293, %s294
      %p306 = scmp.eq.s32.totalorder %s48, 1
      %p307 = por %p305, %p306
      %p309 = scmp.ne.s32.totalorder %s294, %s308
      %p310 = scmp.eq.s32.totalorder %s48, 0
      %p311 = por %p309, %p310
      %s313 = sadd.s32 %s312, 1
      %p316 = scmp.eq.s32.totalorder %s42, 1
      %p317 = scmp.ne.s32.totalorder %s312, %s314
      %p318 = scmp.eq.s32.totalorder %s42, 0
      %p319 = por %p317, %p318
      %p320 = scmp.ne.s32.totalorder %s312, %s314
      %p321 = scmp.eq.s32.totalorder %s47, 1
      %p322 = por %p320, %p321
      %p323 = scmp.ne.s32.totalorder %s314, %s315
      %p324 = scmp.eq.s32.totalorder %s47, 0
      %p325 = por %p323, %p324
      %p326 = scmp.ne.s32.totalorder %s314, %s315
      %p327 = scmp.eq.s32.totalorder %s48, 1
      %p328 = por %p326, %p327
      %p330 = scmp.ne.s32.totalorder %s315, %s329
      %p331 = scmp.eq.s32.totalorder %s48, 0
      %p332 = por %p330, %p331
      %s334 = sadd.s32 %s333, 1
      %p337 = scmp.eq.s32.totalorder %s42, 1
      %p338 = scmp.ne.s32.totalorder %s333, %s335
      %p339 = scmp.eq.s32.totalorder %s42, 0
      %p340 = por %p338, %p339
      %p341 = scmp.ne.s32.totalorder %s333, %s335
      %p342 = scmp.eq.s32.totalorder %s47, 1
      %p343 = por %p341, %p342
      %p344 = scmp.ne.s32.totalorder %s335, %s336
      %p345 = scmp.eq.s32.totalorder %s47, 0
      %p346 = por %p344, %p345
      %p347 = scmp.ne.s32.totalorder %s335, %s336
      %p348 = scmp.eq.s32.totalorder %s48, 1
      %p349 = por %p347, %p348
      %p351 = scmp.ne.s32.totalorder %s336, %s350
      %p352 = scmp.eq.s32.totalorder %s48, 0
      %p353 = por %p351, %p352
      %s355 = sadd.s32 %s354, 1
      %p358 = scmp.eq.s32.totalorder %s42, 1
      %p359 = scmp.ne.s32.totalorder %s354, %s356
      %p360 = scmp.eq.s32.totalorder %s42, 0
      %p361 = por %p359, %p360
      %p362 = scmp.ne.s32.totalorder %s354, %s356
      %p363 = scmp.eq.s32.totalorder %s47, 1
      %p364 = por %p362, %p363
      %p365 = scmp.ne.s32.totalorder %s356, %s357
      %p366 = scmp.eq.s32.totalorder %s47, 0
      %p367 = por %p365, %p366
      %p368 = scmp.ne.s32.totalorder %s356, %s357
      %p369 = scmp.eq.s32.totalorder %s48, 1
      %p370 = por %p368, %p369
      %p372 = scmp.ne.s32.totalorder %s357, %s371
      %p373 = scmp.eq.s32.totalorder %s48, 0
      %p374 = por %p372, %p373
      %s376 = sadd.s32 %s375, 1
      %p379 = scmp.eq.s32.totalorder %s42, 1
      %p380 = scmp.ne.s32.totalorder %s375, %s377
      %p381 = scmp.eq.s32.totalorder %s42, 0
      %p382 = por %p380, %p381
      %p383 = scmp.ne.s32.totalorder %s375, %s377
      %p384 = scmp.eq.s32.totalorder %s47, 1
      %p385 = por %p383, %p384
      %p386 = scmp.ne.s32.totalorder %s377, %s378
      %p387 = scmp.eq.s32.totalorder %s47, 0
      %p388 = por %p386, %p387
      %p389 = scmp.ne.s32.totalorder %s377, %s378
      %p390 = scmp.eq.s32.totalorder %s48, 1
      %p391 = por %p389, %p390
      %p393 = scmp.ne.s32.totalorder %s378, %s392
      %p394 = scmp.eq.s32.totalorder %s48, 0
      %p395 = por %p393, %p394
      %s397 = sadd.s32 %s396, 1
      %p400 = scmp.eq.s32.totalorder %s42, 1
      %p401 = scmp.ne.s32.totalorder %s396, %s398
      %p402 = scmp.eq.s32.totalorder %s42, 0
      %p403 = por %p401, %p402
      %p404 = scmp.ne.s32.totalorder %s396, %s398
      %p405 = scmp.eq.s32.totalorder %s47, 1
      %p406 = por %p404, %p405
      %p407 = scmp.ne.s32.totalorder %s398, %s399
      %p408 = scmp.eq.s32.totalorder %s47, 0
      %p409 = por %p407, %p408
      %p410 = scmp.ne.s32.totalorder %s398, %s399
      %p411 = scmp.eq.s32.totalorder %s48, 1
      %p412 = por %p410, %p411
      %p414 = scmp.ne.s32.totalorder %s399, %s413
      %p415 = scmp.eq.s32.totalorder %s48, 0
      %p416 = por %p414, %p415
      %s418 = sadd.s32 %s417, 1
      %p421 = scmp.eq.s32.totalorder %s42, 1
      %p422 = scmp.ne.s32.totalorder %s417, %s419
      %p423 = scmp.eq.s32.totalorder %s42, 0
      %p424 = por %p422, %p423
      %p425 = scmp.ne.s32.totalorder %s417, %s419
      %p426 = scmp.eq.s32.totalorder %s47, 1
      %p427 = por %p425, %p426
      %p428 = scmp.ne.s32.totalorder %s419, %s420
      %p429 = scmp.eq.s32.totalorder %s47, 0
      %p430 = por %p428, %p429
      %p431 = scmp.ne.s32.totalorder %s419, %s420
      %p432 = scmp.eq.s32.totalorder %s48, 1
      %p433 = por %p431, %p432
      %p435 = scmp.ne.s32.totalorder %s420, %s434
      %p436 = scmp.eq.s32.totalorder %s48, 0
      %p437 = por %p435, %p436
      %s439 = sadd.s32 %s438, 1
      %p442 = scmp.eq.s32.totalorder %s42, 1
      %p443 = scmp.ne.s32.totalorder %s438, %s440
      %p444 = scmp.eq.s32.totalorder %s42, 0
      %p445 = por %p443, %p444
      %p446 = scmp.ne.s32.totalorder %s438, %s440
      %p447 = scmp.eq.s32.totalorder %s47, 1
      %p448 = por %p446, %p447
      %p449 = scmp.ne.s32.totalorder %s440, %s441
      %p450 = scmp.eq.s32.totalorder %s47, 0
      %p451 = por %p449, %p450
      %p452 = scmp.ne.s32.totalorder %s440, %s441
      %p453 = scmp.eq.s32.totalorder %s48, 1
      %p454 = por %p452, %p453
      %p456 = scmp.ne.s32.totalorder %s441, %s455
      %p457 = scmp.eq.s32.totalorder %s48, 0
      %p458 = por %p456, %p457
      %s460 = sadd.s32 %s459, 1
      %p463 = scmp.eq.s32.totalorder %s42, 1
      %p464 = scmp.ne.s32.totalorder %s459, %s461
      %p465 = scmp.eq.s32.totalorder %s42, 0
      %p466 = por %p464, %p465
      %p467 = scmp.ne.s32.totalorder %s459, %s461
      %p468 = scmp.eq.s32.totalorder %s47, 1
      %p469 = por %p467, %p468
      %p470 = scmp.ne.s32.totalorder %s461, %s462
      %p471 = scmp.eq.s32.totalorder %s47, 0
      %p472 = por %p470, %p471
      %p473 = scmp.ne.s32.totalorder %s461, %s462
      %p474 = scmp.eq.s32.totalorder %s48, 1
      %p475 = por %p473, %p474
      %p477 = scmp.ne.s32.totalorder %s462, %s476
      %p478 = scmp.eq.s32.totalorder %s48, 0
      %p479 = por %p477, %p478
      %s481 = sadd.s32 %s480, 1
      %p484 = scmp.eq.s32.totalorder %s42, 1
      %p485 = scmp.ne.s32.totalorder %s480, %s482
      %p486 = scmp.eq.s32.totalorder %s42, 0
      %p487 = por %p485, %p486
      %p488 = scmp.ne.s32.totalorder %s480, %s482
      %p489 = scmp.eq.s32.totalorder %s47, 1
      %p490 = por %p488, %p489
      %p491 = scmp.ne.s32.totalorder %s482, %s483
      %p492 = scmp.eq.s32.totalorder %s47, 0
      %p493 = por %p491, %p492
      %p494 = scmp.ne.s32.totalorder %s482, %s483
      %p495 = scmp.eq.s32.totalorder %s48, 1
      %p496 = por %p494, %p495
      %p498 = scmp.ne.s32.totalorder %s483, %s497
      %p499 = scmp.eq.s32.totalorder %s48, 0
      %p500 = por %p498, %p499
      %s502 = sadd.s32 %s501, 1
      %p505 = scmp.eq.s32.totalorder %s42, 1
      %p506 = scmp.ne.s32.totalorder %s501, %s503
      %p507 = scmp.eq.s32.totalorder %s42, 0
      %p508 = por %p506, %p507
      %p509 = scmp.ne.s32.totalorder %s501, %s503
      %p510 = scmp.eq.s32.totalorder %s47, 1
      %p511 = por %p509, %p510
      %p512 = scmp.ne.s32.totalorder %s503, %s504
      %p513 = scmp.eq.s32.totalorder %s47, 0
      %p514 = por %p512, %p513
      %p515 = scmp.ne.s32.totalorder %s503, %s504
      %p516 = scmp.eq.s32.totalorder %s48, 1
      %p517 = por %p515, %p516
      %p519 = scmp.ne.s32.totalorder %s504, %s518
      %p520 = scmp.eq.s32.totalorder %s48, 0
      %p521 = por %p519, %p520
      %s523 = sadd.s32 %s522, 1
      %p526 = scmp.eq.s32.totalorder %s42, 1
      %p527 = scmp.ne.s32.totalorder %s522, %s524
      %p528 = scmp.eq.s32.totalorder %s42, 0
      %p529 = por %p527, %p528
      %p530 = scmp.ne.s32.totalorder %s522, %s524
      %p531 = scmp.eq.s32.totalorder %s47, 1
      %p532 = por %p530, %p531
      %p533 = scmp.ne.s32.totalorder %s524, %s525
      %p534 = scmp.eq.s32.totalorder %s47, 0
      %p535 = por %p533, %p534
      %p536 = scmp.ne.s32.totalorder %s524, %s525
      %p537 = scmp.eq.s32.totalorder %s48, 1
      %p538 = por %p536, %p537
      %p540 = scmp.ne.s32.totalorder %s525, %s539
      %p541 = scmp.eq.s32.totalorder %s48, 0
      %p542 = por %p540, %p541
      %s543 = ssub.s32 %s42, %s49
      %p544 = scmp.eq.s32.totalorder %s543, 0
      %s546 = sadd.s32 %s545, 1
      %s547 = scalar_select %p544, %s545, %s546
      %p550 = pneg %p544
      %p551 = scmp.eq.s32.totalorder %s42, 1
      %p552 = por %p550, %p551
      %p553 = scmp.ne.s32.totalorder %s545, %s548
      %p554 = scmp.eq.s32.totalorder %s42, 0
      %p555 = por %p553, %p554
      %p556 = scmp.ne.s32.totalorder %s545, %s548
      %p557 = scmp.eq.s32.totalorder %s47, 1
      %p558 = por %p556, %p557
      %p559 = scmp.ne.s32.totalorder %s548, %s549
      %p560 = scmp.eq.s32.totalorder %s47, 0
      %p561 = por %p559, %p560
      %p562 = scmp.ne.s32.totalorder %s548, %s549
      %p563 = scmp.eq.s32.totalorder %s48, 1
      %p564 = por %p562, %p563
      %p566 = scmp.ne.s32.totalorder %s549, %s565
      %p567 = scmp.eq.s32.totalorder %s48, 0
      %p568 = por %p566, %p567
      %s569 = ssub.s32 %s42, %s49
      %p570 = scmp.eq.s32.totalorder %s569, 0
      %s572 = sadd.s32 %s571, 1
      %s573 = scalar_select %p570, %s571, %s572
      %p576 = pneg %p570
      %p577 = scmp.eq.s32.totalorder %s42, 1
      %p578 = por %p576, %p577
      %p579 = scmp.ne.s32.totalorder %s571, %s574
      %p580 = scmp.eq.s32.totalorder %s42, 0
      %p581 = por %p579, %p580
      %p582 = scmp.ne.s32.totalorder %s571, %s574
      %p583 = scmp.eq.s32.totalorder %s47, 1
      %p584 = por %p582, %p583
      %p585 = scmp.ne.s32.totalorder %s574, %s575
      %p586 = scmp.eq.s32.totalorder %s47, 0
      %p587 = por %p585, %p586
      %p588 = scmp.ne.s32.totalorder %s574, %s575
      %p589 = scmp.eq.s32.totalorder %s48, 1
      %p590 = por %p588, %p589
      %p592 = scmp.ne.s32.totalorder %s575, %s591
      %p593 = scmp.eq.s32.totalorder %s48, 0
      %p594 = por %p592, %p593
      %p595 = scmp.le.s32.totalorder 1, %s42
      %p596 = scmp.lt.s32.totalorder %s42, 3
      %p597 = pnand %p595, %p596
      %p598 = pneg %p597
      // Predicated region
      $region9: #{forward.1} parent=5 // pred_check
        _
      $region10: #{forward.1} parent=5 // pred_check_branch
        %600 = sbr.rel (%p597) target = $region12
      $region11: #{forward.1} parent=5 // pred_region
        %s601 = ssub.s32 %s42, 1
        // Predicated region
        $region13: #{forward.1} parent=11 // pred_check
          %p602 = pneg %p115
        $region14: #{forward.1} parent=11 // pred_check_branch
          %604 = sbr.rel (%p602) target = $region16
        $region15: #{forward.1} parent=11 // pred_region
          %606 = vsyncadd [#allocation5], 0
          %s607 = sshll.u32 %s2, 4
          %s608 = int_to_ptr.hbm [resolvable:$true] %s607
          %s609 = sshll.u32 [#allocation4], 4
          %s610 = int_to_ptr.vmem [resolvable:$true] %s609
          %615 = dma.hbm_to_vmem [thread:$0]  %s608, 256, %s610, [#allocation5], 128, 128, 8
        $region16: #{forward.1} parent=11 // pred_fallthru
          _
        // Predicated region
        $region17: #{forward.1} parent=11 // pred_check
          %p616 = pneg %p136
        $region18: #{forward.1} parent=11 // pred_check_branch
          %618 = sbr.rel (%p616) target = $region20
        $region19: #{forward.1} parent=11 // pred_region
          _
        $region20: #{forward.1} parent=11 // pred_fallthru
          _
        // Predicated region
        $region21: #{forward.1} parent=11 // pred_check
          %p619 = pneg %p157
        $region22: #{forward.1} parent=11 // pred_check_branch
          %621 = sbr.rel (%p619) target = $region24
        $region23: #{forward.1} parent=11 // pred_region
          _
        $region24: #{forward.1} parent=11 // pred_fallthru
          _
        // Predicated region
        $region25: #{forward.1} parent=11 // pred_check
          %p622 = pneg %p178
        $region26: #{forward.1} parent=11 // pred_check_branch
          %624 = sbr.rel (%p622) target = $region28
        $region27: #{forward.1} parent=11 // pred_region
          _
        $region28: #{forward.1} parent=11 // pred_fallthru
          _
        // Predicated region
        $region29: #{forward.1} parent=11 // pred_check
          %p625 = pneg %p199
        $region30: #{forward.1} parent=11 // pred_check_branch
          %627 = sbr.rel (%p625) target = $region32
        $region31: #{forward.1} parent=11 // pred_region
          _
        $region32: #{forward.1} parent=11 // pred_fallthru
          _
        // Predicated region
        $region33: #{forward.1} parent=11 // pred_check
          %p628 = pneg %p220
        $region34: #{forward.1} parent=11 // pred_check_branch
          %630 = sbr.rel (%p628) target = $region36
        $region35: #{forward.1} parent=11 // pred_region
          %632 = vsyncadd [#allocation8], 0
          %s634 = sshll.u32 %s7, 4
          %s635 = int_to_ptr.hbm [resolvable:$true] %s634
          %s636 = sshll.u32 [#allocation7], 4
          %s637 = int_to_ptr.vmem [resolvable:$true] %s636
          %639 = dma.hbm_to_vmem [thread:$0]  %s635, 128, %s637, [#allocation8]
        $region36: #{forward.1} parent=11 // pred_fallthru
          _
        // Predicated region
        $region37: #{forward.1} parent=11 // pred_check
          %p640 = pneg %p241
        $region38: #{forward.1} parent=11 // pred_check_branch
          %642 = sbr.rel (%p640) target = $region40
        $region39: #{forward.1} parent=11 // pred_region
          _
        $region40: #{forward.1} parent=11 // pred_fallthru
          _
        // Predicated region
        $region41: #{forward.1} parent=11 // pred_check
          %p643 = pneg %p262
        $region42: #{forward.1} parent=11 // pred_check_branch
          %645 = sbr.rel (%p643) target = $region44
        $region43: #{forward.1} parent=11 // pred_region
          %647 = vsyncadd [#allocation8], 0
          %s648 = sshll.u32 %s9, 4
          %s649 = int_to_ptr.hbm [resolvable:$true] %s648
          %s650 = sshll.u32 [#allocation9], 4
          %s651 = int_to_ptr.vmem [resolvable:$true] %s650
          %656 = dma.hbm_to_vmem [thread:$0]  %s649, 8192, %s651, [#allocation8], 128, 128, 8
        $region44: #{forward.1} parent=11 // pred_fallthru
          _
        // Predicated region
        $region45: #{forward.1} parent=11 // pred_check
          %p657 = pneg %p283
        $region46: #{forward.1} parent=11 // pred_check_branch
          %659 = sbr.rel (%p657) target = $region48
        $region47: #{forward.1} parent=11 // pred_region
          _
        $region48: #{forward.1} parent=11 // pred_fallthru
          _
        // Predicated region
        $region49: #{forward.1} parent=11 // pred_check
          %p660 = pneg %p304
        $region50: #{forward.1} parent=11 // pred_check_branch
          %662 = sbr.rel (%p660) target = $region52
        $region51: #{forward.1} parent=11 // pred_region
          _
        $region52: #{forward.1} parent=11 // pred_fallthru
          _
        // Predicated region
        $region53: #{forward.1} parent=11 // pred_check
          %p663 = pneg %p325
        $region54: #{forward.1} parent=11 // pred_check_branch
          %665 = sbr.rel (%p663) target = $region56
        $region55: #{forward.1} parent=11 // pred_region
          _
        $region56: #{forward.1} parent=11 // pred_fallthru
          _
        // Predicated region
        $region57: #{forward.1} parent=11 // pred_check
          %p666 = pneg %p346
        $region58: #{forward.1} parent=11 // pred_check_branch
          %668 = sbr.rel (%p666) target = $region60
        $region59: #{forward.1} parent=11 // pred_region
          %670 = vsyncadd [#allocation11], 0
          %s671 = sshll.u32 %s13, 4
          %s672 = int_to_ptr.hbm [resolvable:$true] %s671
          %s673 = sshll.u32 [#allocation10], 4
          %s674 = int_to_ptr.vmem [resolvable:$true] %s673
          %679 = dma.hbm_to_vmem [thread:$0]  %s672, 8192, %s674, [#allocation11], 128, 128, 8
        $region60: #{forward.1} parent=11 // pred_fallthru
          _
        // Predicated region
        $region61: #{forward.1} parent=11 // pred_check
          %p680 = pneg %p367
        $region62: #{forward.1} parent=11 // pred_check_branch
          %682 = sbr.rel (%p680) target = $region64
        $region63: #{forward.1} parent=11 // pred_region
          _
        $region64: #{forward.1} parent=11 // pred_fallthru
          _
        // Predicated region
        $region65: #{forward.1} parent=11 // pred_check
          %p683 = pneg %p388
        $region66: #{forward.1} parent=11 // pred_check_branch
          %685 = sbr.rel (%p683) target = $region68
        $region67: #{forward.1} parent=11 // pred_region
          %687 = vsyncadd [#allocation11], 0
          %s688 = sshll.u32 %s15, 4
          %s689 = int_to_ptr.hbm [resolvable:$true] %s688
          %s690 = sshll.u32 [#allocation12], 4
          %s691 = int_to_ptr.vmem [resolvable:$true] %s690
          %696 = dma.hbm_to_vmem [thread:$0]  %s689, 2048, %s691, [#allocation11], 128, 128, 8
        $region68: #{forward.1} parent=11 // pred_fallthru
          _
        // Predicated region
        $region69: #{forward.1} parent=11 // pred_check
          %p697 = pneg %p409
        $region70: #{forward.1} parent=11 // pred_check_branch
          %699 = sbr.rel (%p697) target = $region72
        $region71: #{forward.1} parent=11 // pred_region
          _
        $region72: #{forward.1} parent=11 // pred_fallthru
          _
        // Predicated region
        $region73: #{forward.1} parent=11 // pred_check
          %p700 = pneg %p430
        $region74: #{forward.1} parent=11 // pred_check_branch
          %702 = sbr.rel (%p700) target = $region76
        $region75: #{forward.1} parent=11 // pred_region
          %704 = vsyncadd [#allocation14], 0
          %s705 = sshll.u32 %s17, 4
          %s706 = int_to_ptr.hbm [resolvable:$true] %s705
          %s707 = sshll.u32 [#allocation13], 4
          %s708 = int_to_ptr.vmem [resolvable:$true] %s707
          %713 = dma.hbm_to_vmem [thread:$0]  %s706, 2048, %s708, [#allocation14], 128, 128, 8
        $region76: #{forward.1} parent=11 // pred_fallthru
          _
        // Predicated region
        $region77: #{forward.1} parent=11 // pred_check
          %p714 = pneg %p451
        $region78: #{forward.1} parent=11 // pred_check_branch
          %716 = sbr.rel (%p714) target = $region80
        $region79: #{forward.1} parent=11 // pred_region
          _
        $region80: #{forward.1} parent=11 // pred_fallthru
          _
        // Predicated region
        $region81: #{forward.1} parent=11 // pred_check
          %p717 = pneg %p472
        $region82: #{forward.1} parent=11 // pred_check_branch
          %719 = sbr.rel (%p717) target = $region84
        $region83: #{forward.1} parent=11 // pred_region
          %721 = vsyncadd [#allocation14], 0
          %s722 = sshll.u32 %s19, 4
          %s723 = int_to_ptr.hbm [resolvable:$true] %s722
          %s724 = sshll.u32 [#allocation15], 4
          %s725 = int_to_ptr.vmem [resolvable:$true] %s724
          %730 = dma.hbm_to_vmem [thread:$0]  %s723, 8192, %s725, [#allocation14], 512, 512, 32
        $region84: #{forward.1} parent=11 // pred_fallthru
          _
        // Predicated region
        $region85: #{forward.1} parent=11 // pred_check
          %p731 = pneg %p493
        $region86: #{forward.1} parent=11 // pred_check_branch
          %733 = sbr.rel (%p731) target = $region88
        $region87: #{forward.1} parent=11 // pred_region
          _
        $region88: #{forward.1} parent=11 // pred_fallthru
          _
        // Predicated region
        $region89: #{forward.1} parent=11 // pred_check
          %p734 = pneg %p514
        $region90: #{forward.1} parent=11 // pred_check_branch
          %736 = sbr.rel (%p734) target = $region92
        $region91: #{forward.1} parent=11 // pred_region
          %738 = vsyncadd [#allocation17], 0
          %s739 = sshll.u32 %s21, 4
          %s740 = int_to_ptr.hbm [resolvable:$true] %s739
          %s741 = sshll.u32 [#allocation16], 4
          %s742 = int_to_ptr.vmem [resolvable:$true] %s741
          %747 = dma.hbm_to_vmem [thread:$0]  %s740, 8192, %s742, [#allocation17], 128, 128, 8
        $region92: #{forward.1} parent=11 // pred_fallthru
          _
        // Predicated region
        $region93: #{forward.1} parent=11 // pred_check
          %p748 = pneg %p535
        $region94: #{forward.1} parent=11 // pred_check_branch
          %750 = sbr.rel (%p748) target = $region96
        $region95: #{forward.1} parent=11 // pred_region
          _
        $region96: #{forward.1} parent=11 // pred_fallthru
          _
      $region12: #{forward.1} parent=5 // pred_fallthru
        _
      %p751 = scmp.lt.s32.totalorder %s42, 2
      // Predicated region
      $region97: #{forward.1} parent=5 // pred_check
        %p752 = pneg %p751
      $region98: #{forward.1} parent=5 // pred_check_branch
        %754 = sbr.rel (%p752) target = $region100
      $region99: #{forward.1} parent=5 // pred_region
        // Predicated region
        $region101: #{forward.1} parent=99 // pred_check
          %p755 = pneg %p62
        $region102: #{forward.1} parent=99 // pred_check_branch
          %757 = sbr.rel (%p755) target = $region104
        $region103: #{forward.1} parent=99 // pred_region
          %p758 = scmp.lt.s32.totalorder %s42, 1
          %s759 = scalar_select %p758, %s42, 1
          %s760 = smul.addr %s759, 2
          %s761 = smul.addr %s760, 8
          %s762 = scalar_lea.vmem %s0, %s761
        $region104: #{forward.1} parent=99 // pred_fallthru
          _
        // Predicated region
        $region105: #{forward.1} parent=99 // pred_check
          %p763 = pneg %p88
        $region106: #{forward.1} parent=99 // pred_check_branch
          %765 = sbr.rel (%p763) target = $region108
        $region107: #{forward.1} parent=99 // pred_region
          %p766 = scmp.lt.s32.totalorder %s42, 1
          %s767 = scalar_select %p766, %s42, 1
          %s768 = smul.addr %s767, 2
          %s769 = smul.addr %s768, 8
          %s770 = scalar_lea.vmem %s1, %s769
        $region108: #{forward.1} parent=99 // pred_fallthru
          _
      $region100: #{forward.1} parent=5 // pred_fallthru
        _
      %p771 = scmp.le.s32.totalorder 1, %s42
      %p772 = scmp.lt.s32.totalorder %s42, 3
      %p773 = pnand %p771, %p772
      %p774 = pneg %p773
      // Predicated region
      $region109: #{forward.1} parent=5 // pred_check
        _
      $region110: #{forward.1} parent=5 // pred_check_branch
        %776 = sbr.rel (%p773) target = $region112
      $region111: #{forward.1} parent=5 // pred_region
        %s777 = ssub.s32 %s42, 1
        // Predicated region
        $region113: #{forward.1} parent=111 // pred_check
          %p778 = pneg %p115
        $region114: #{forward.1} parent=111 // pred_check_branch
          %780 = sbr.rel (%p778) target = $region116
        $region115: #{forward.1} parent=111 // pred_region
          %782 = dma.done [#allocation5], 256
        $region116: #{forward.1} parent=111 // pred_fallthru
          _
        // Predicated region
        $region117: #{forward.1} parent=111 // pred_check
          %p783 = pneg %p220
        $region118: #{forward.1} parent=111 // pred_check_branch
          %785 = sbr.rel (%p783) target = $region120
        $region119: #{forward.1} parent=111 // pred_region
          %787 = dma.done [#allocation8], 128
        $region120: #{forward.1} parent=111 // pred_fallthru
          _
        // Predicated region
        $region121: #{forward.1} parent=111 // pred_check
          %p788 = pneg %p262
        $region122: #{forward.1} parent=111 // pred_check_branch
          %790 = sbr.rel (%p788) target = $region124
        $region123: #{forward.1} parent=111 // pred_region
          %792 = dma.done [#allocation8], 8192
        $region124: #{forward.1} parent=111 // pred_fallthru
          _
        // Predicated region
        $region125: #{forward.1} parent=111 // pred_check
          %p793 = pneg %p346
        $region126: #{forward.1} parent=111 // pred_check_branch
          %795 = sbr.rel (%p793) target = $region128
        $region127: #{forward.1} parent=111 // pred_region
          %797 = dma.done [#allocation11], 8192
        $region128: #{forward.1} parent=111 // pred_fallthru
          _
        // Predicated region
        $region129: #{forward.1} parent=111 // pred_check
          %p798 = pneg %p388
        $region130: #{forward.1} parent=111 // pred_check_branch
          %800 = sbr.rel (%p798) target = $region132
        $region131: #{forward.1} parent=111 // pred_region
          %802 = dma.done [#allocation11], 2048
        $region132: #{forward.1} parent=111 // pred_fallthru
          _
        // Predicated region
        $region133: #{forward.1} parent=111 // pred_check
          %p803 = pneg %p430
        $region134: #{forward.1} parent=111 // pred_check_branch
          %805 = sbr.rel (%p803) target = $region136
        $region135: #{forward.1} parent=111 // pred_region
          %807 = dma.done [#allocation14], 2048
        $region136: #{forward.1} parent=111 // pred_fallthru
          _
        // Predicated region
        $region137: #{forward.1} parent=111 // pred_check
          %p808 = pneg %p472
        $region138: #{forward.1} parent=111 // pred_check_branch
          %810 = sbr.rel (%p808) target = $region140
        $region139: #{forward.1} parent=111 // pred_region
          %812 = dma.done [#allocation14], 8192
        $region140: #{forward.1} parent=111 // pred_fallthru
          _
        // Predicated region
        $region141: #{forward.1} parent=111 // pred_check
          %p813 = pneg %p514
        $region142: #{forward.1} parent=111 // pred_check_branch
          %815 = sbr.rel (%p813) target = $region144
        $region143: #{forward.1} parent=111 // pred_region
          %817 = dma.done [#allocation17], 8192
        $region144: #{forward.1} parent=111 // pred_fallthru
          _
        %p818 = scmp.lt.s32.totalorder %s47, 1
        %s819 = scalar_select %p818, %s47, 1
        %s820 = smul.addr %s819, 2
        %s821 = smul.addr %s820, 8
        %s822 = scalar_lea.vmem %s0, %s821
        %p823 = pneg %p68
        %p824 = pneg %p65
        %p825 = scmp.lt.s32.totalorder %s47, 1
        %s826 = scalar_select %p825, %s47, 1
        %s827 = smul.addr %s826, 2
        %s828 = smul.addr %s827, 8
        %s829 = scalar_lea.vmem %s1, %s828
        %p830 = pneg %p94
        %p831 = pneg %p91
        %p832 = pneg %p115
        %p833 = pneg %p112
        %p834 = pneg %p136
        %p835 = pneg %p133
        %p836 = pneg %p157
        %p837 = pneg %p154
        %p838 = pneg %p178
        %p839 = pneg %p175
        %p840 = pneg %p199
        %p841 = pneg %p196
        %p842 = pneg %p220
        %p843 = pneg %p217
        %p844 = pneg %p241
        %p845 = pneg %p238
        %p846 = pneg %p262
        %p847 = pneg %p259
        %p848 = pneg %p283
        %p849 = pneg %p280
        %p850 = pneg %p304
        %p851 = pneg %p301
        %p852 = pneg %p325
        %p853 = pneg %p322
        %p854 = pneg %p346
        %p855 = pneg %p343
        %p856 = pneg %p367
        %p857 = pneg %p364
        %p858 = pneg %p388
        %p859 = pneg %p385
        %p860 = pneg %p409
        %p861 = pneg %p406
        %p862 = pneg %p430
        %p863 = pneg %p427
        %p864 = pneg %p451
        %p865 = pneg %p448
        %p866 = pneg %p472
        %p867 = pneg %p469
        %p868 = pneg %p493
        %p869 = pneg %p490
        %p870 = pneg %p514
        %p871 = pneg %p511
        %p872 = pneg %p535
        %p873 = pneg %p532
        %p874 = pneg %p561
        %p875 = pneg %p558
        %s876 = sand.u32 %s548, 1
        %s877 = scalar_lea.sflag [#allocation6], %s876
        %s878 = sand.u32 %s548, 1
        %s879 = scalar_lea.vmem [#allocation18], %s878
        %p880 = pneg %p587
        %p881 = pneg %p584
        %s882 = sand.u32 %s574, 1
        %s883 = scalar_lea.sflag [#allocation20], %s882
        %s884 = sand.u32 %s574, 1
        %s885 = scalar_lea.vmem [#allocation19], %s884
        %p886 = scmp.lt.s32.totalorder %s47, 1
        %s887 = scalar_select %p886, %s47, 1
        %s888 = smul.addr %s887, 2
        %s889 = smul.addr %s888, 8
        %s890 = scalar_lea.vmem %s0, %s889
        %p891 = scmp.lt.s32.totalorder %s47, 1
        %s892 = scalar_select %p891, %s47, 1
        %s893 = smul.addr %s892, 2
        %s894 = smul.addr %s893, 8
        %s895 = scalar_lea.vmem %s1, %s894
        %v896 = vld [vmem:[%s890] sm:$0xff]
        %v897 = vld [vmem:[%s890 + $0x8] sm:$0xff]
        %v898 = vld [vmem:[%s895] sm:$0xff]
        %v899 = vld [vmem:[%s895 + $0x8] sm:$0xff]
        %v900 = vld [vmem:[#allocation4] sm:$0xff]
        %v901 = vld [vmem:[#allocation4 + $0x8] sm:$0xff]
        %v902 = vld [vmem:[%s3] sm:$0x1]
        %v904 = vperm.slane %v902, 0
        %vm906 = vcmask 130048
        %v908 = vsel %vm906, %v896, 0
        %v911 = vsel %vm906, %v897, 0
        %913 = vmatpush.msra.mxu0 0.0
        %914 = vmatpush.msra.mxu0 0.0
        %915 = vmatpush.msra.mxu0 0.0
        %916 = vmatpush.msra.mxu0 0.0
        %917 = vmatpush.msra.mxu0 0.0
        %918 = vmatpush.msra.mxu0 0.0
        %919 = vmatpush.msra.mxu0 0.0
        %920 = vmatpush.msra.mxu0 0.0
        %921 = vmatpush.msra.mxu0 0.0
        %922 = vmatpush.msra.mxu0 0.0
        %923 = vmatpush.msra.mxu0 0.0
        %924 = vmatpush.msra.mxu0 0.0
        %925 = vmatpush.msra.mxu0 0.0
        %926 = vmatpush.msra.mxu0 0.0
        %927 = vmatpush.msra.mxu0 %v901
        %928 = vmatpush.msra.mxu0 %v900
        %929 = vmatmul.f32.gmra.mxu0 %v908
        %v930 = vpop.f32.mrf.mxu0
        %v931 = vadd.f32 %v904, %v930
        %932 = vmatmul.f32.gmra.mxu0 %v911
        %v933 = vpop.f32.mrf.mxu0
        %v934 = vadd.f32 %v904, %v933
        %935 = vdwg.mxu0
        %v936 = vmax.f32 %v931, 0.0
        %v937 = vmax.f32 %v934, 0.0
        %v938 = vld [vmem:[%s4] sm:$0xff]
        %v939 = vld [vmem:[%s4 + $0x8] sm:$0xff]
        %v940 = vld [vmem:[%s4 + $0x10] sm:$0xff]
        %v941 = vld [vmem:[%s4 + $0x18] sm:$0xff]
        %v942 = vld [vmem:[%s4 + $0x20] sm:$0xff]
        %v943 = vld [vmem:[%s4 + $0x28] sm:$0xff]
        %v944 = vld [vmem:[%s4 + $0x30] sm:$0xff]
        %v945 = vld [vmem:[%s4 + $0x38] sm:$0xff]
        %v946 = vld [vmem:[%s4 + $0x40] sm:$0xff]
        %v947 = vld [vmem:[%s4 + $0x48] sm:$0xff]
        %v948 = vld [vmem:[%s4 + $0x50] sm:$0xff]
        %v949 = vld [vmem:[%s4 + $0x58] sm:$0xff]
        %v950 = vld [vmem:[%s4 + $0x60] sm:$0xff]
        %v951 = vld [vmem:[%s4 + $0x68] sm:$0xff]
        %v952 = vld [vmem:[%s4 + $0x70] sm:$0xff]
        %v953 = vld [vmem:[%s4 + $0x78] sm:$0xff]
        %v954 = vld [vmem:[%s5] sm:$0x1]
        %v956 = vperm.slane %v954, 0
        %958 = vmatpush.msra.mxu0 %v953
        %959 = vmatpush.msra.mxu0 %v952
        %960 = vmatpush.msra.mxu0 %v951
        %961 = vmatpush.msra.mxu0 %v950
        %962 = vmatpush.msra.mxu0 %v949
        %963 = vmatpush.msra.mxu0 %v948
        %964 = vmatpush.msra.mxu0 %v947
        %965 = vmatpush.msra.mxu0 %v946
        %966 = vmatpush.msra.mxu0 %v945
        %967 = vmatpush.msra.mxu0 %v944
        %968 = vmatpush.msra.mxu0 %v943
        %969 = vmatpush.msra.mxu0 %v942
        %970 = vmatpush.msra.mxu0 %v941
        %971 = vmatpush.msra.mxu0 %v940
        %972 = vmatpush.msra.mxu0 %v939
        %973 = vmatpush.msra.mxu0 %v938
        %974 = vmatmul.f32.gmra.mxu0 %v936
        %v975 = vpop.f32.mrf.mxu0
        %v976 = vadd.f32 %v956, %v975
        %977 = vmatmul.f32.gmra.mxu0 %v937
        %v978 = vpop.f32.mrf.mxu0
        %v979 = vadd.f32 %v956, %v978
        %980 = vdwg.mxu0
        %v981 = vmax.f32 %v976, 0.0
        %v982 = vmax.f32 %v979, 0.0
        %v983 = vld [vmem:[%s6] sm:$0xff]
        %v984 = vld [vmem:[%s6 + $0x8] sm:$0xff]
        %v985 = vld [vmem:[%s6 + $0x10] sm:$0xff]
        %v986 = vld [vmem:[%s6 + $0x18] sm:$0xff]
        %v987 = vld [vmem:[%s6 + $0x20] sm:$0xff]
        %v988 = vld [vmem:[%s6 + $0x28] sm:$0xff]
        %v989 = vld [vmem:[%s6 + $0x30] sm:$0xff]
        %v990 = vld [vmem:[%s6 + $0x38] sm:$0xff]
        %v991 = vld [vmem:[%s6 + $0x40] sm:$0xff]
        %v992 = vld [vmem:[%s6 + $0x48] sm:$0xff]
        %v993 = vld [vmem:[%s6 + $0x50] sm:$0xff]
        %v994 = vld [vmem:[%s6 + $0x58] sm:$0xff]
        %v995 = vld [vmem:[%s6 + $0x60] sm:$0xff]
        %v996 = vld [vmem:[%s6 + $0x68] sm:$0xff]
        %v997 = vld [vmem:[%s6 + $0x70] sm:$0xff]
        %v998 = vld [vmem:[%s6 + $0x78] sm:$0xff]
        %v999 = vld [vmem:[#allocation7] sm:$0xff]
        %vm1000 = vcmask 64512
        %v1002 = vsel %vm1000, %v898, 0
        %v1005 = vsel %vm1000, %v899, 0
        %1007 = vmatpush.msra.mxu0 0.0
        %1008 = vmatpush.msra.mxu0 0.0
        %1009 = vmatpush.msra.mxu0 0.0
        %1010 = vmatpush.msra.mxu0 0.0
        %1011 = vmatpush.msra.mxu0 0.0
        %1012 = vmatpush.msra.mxu0 0.0
        %1013 = vmatpush.msra.mxu0 0.0
        %1014 = vmatpush.msra.mxu0 0.0
        %1015 = vmatpush.msra.mxu0 0.0
        %1016 = vmatpush.msra.mxu0 0.0
        %1017 = vmatpush.msra.mxu0 0.0
        %1018 = vmatpush.msra.mxu0 0.0
        %1019 = vmatpush.msra.mxu0 0.0
        %1020 = vmatpush.msra.mxu0 0.0
        %1021 = vmatpush.msra.mxu0 0.0
        %1022 = vmatpush.msra.mxu0 %v999
        %1023 = vmatmul.f32.gmra.mxu0 %v1002
        %v1024 = vpop.f32.mrf.mxu0
        %v1025 = vadd.f32 0.0, %v1024
        %1026 = vmatmul.f32.gmra.mxu0 %v1005
        %v1027 = vpop.f32.mrf.mxu0
        %v1028 = vadd.f32 0.0, %v1027
        %1029 = vdwg.mxu0
        %1030 = vmatpush.msra.mxu0 %v998
        %1031 = vmatpush.msra.mxu0 %v997
        %1032 = vmatpush.msra.mxu0 %v996
        %1033 = vmatpush.msra.mxu0 %v995
        %1034 = vmatpush.msra.mxu0 %v994
        %1035 = vmatpush.msra.mxu0 %v993
        %1036 = vmatpush.msra.mxu0 %v992
        %1037 = vmatpush.msra.mxu0 %v991
        %1038 = vmatpush.msra.mxu0 %v990
        %1039 = vmatpush.msra.mxu0 %v989
        %1040 = vmatpush.msra.mxu0 %v988
        %1041 = vmatpush.msra.mxu0 %v987
        %1042 = vmatpush.msra.mxu0 %v986
        %1043 = vmatpush.msra.mxu0 %v985
        %1044 = vmatpush.msra.mxu0 %v984
        %1045 = vmatpush.msra.mxu0 %v983
        %1046 = vmatmul.f32.gmra.mxu0 %v981
        %v1047 = vpop.f32.mrf.mxu0
        %v1048 = vadd.f32 %v1025, %v1047
        %1049 = vmatmul.f32.gmra.mxu0 %v982
        %v1050 = vpop.f32.mrf.mxu0
        %v1051 = vadd.f32 %v1028, %v1050
        %1052 = vdwg.mxu0
        %v1053 = vld [vmem:[%s8] sm:$0x1]
        %v1055 = vperm.slane %v1053, 0
        %v1057 = vadd.f32 %v1048, %v1055
        %v1058 = vadd.f32 %v1051, %v1055
        %v1059 = vmax.f32 %v1057, 0.0
        %v1060 = vmax.f32 %v1058, 0.0
        %1061 = vst [vmem:[#allocation2] sm:$0xff] %v1059
        %1062 = vst [vmem:[#allocation2 + $0x8] sm:$0xff] %v1060
        %v1063 = vld [vmem:[#allocation2] sm:$0xf]
        %v1064 = vld [vmem:[#allocation9] sm:$0xff]
        %v1065 = vld [vmem:[#allocation9 + $0x8] sm:$0xff]
        %v1066 = vld [vmem:[#allocation9 + $0x10] sm:$0xff]
        %v1067 = vld [vmem:[#allocation9 + $0x18] sm:$0xff]
        %v1068 = vld [vmem:[#allocation9 + $0x20] sm:$0xff]
        %v1069 = vld [vmem:[#allocation9 + $0x28] sm:$0xff]
        %v1070 = vld [vmem:[#allocation9 + $0x30] sm:$0xff]
        %v1071 = vld [vmem:[#allocation9 + $0x38] sm:$0xff]
        %v1072 = vld [vmem:[#allocation9 + $0x40] sm:$0xff]
        %v1073 = vld [vmem:[#allocation9 + $0x48] sm:$0xff]
        %v1074 = vld [vmem:[#allocation9 + $0x50] sm:$0xff]
        %v1075 = vld [vmem:[#allocation9 + $0x58] sm:$0xff]
        %v1076 = vld [vmem:[#allocation9 + $0x60] sm:$0xff]
        %v1077 = vld [vmem:[#allocation9 + $0x68] sm:$0xff]
        %v1078 = vld [vmem:[#allocation9 + $0x70] sm:$0xff]
        %v1079 = vld [vmem:[#allocation9 + $0x78] sm:$0xff]
        %v1080 = vld [vmem:[#allocation2 + $0x4] sm:$0xf]
        %v1081 = vld [vmem:[#allocation9 + $0x80] sm:$0xff]
        %v1082 = vld [vmem:[#allocation9 + $0x88] sm:$0xff]
        %v1083 = vld [vmem:[#allocation9 + $0x90] sm:$0xff]
        %v1084 = vld [vmem:[#allocation9 + $0x98] sm:$0xff]
        %v1085 = vld [vmem:[#allocation9 + $0xa0] sm:$0xff]
        %v1086 = vld [vmem:[#allocation9 + $0xa8] sm:$0xff]
        %v1087 = vld [vmem:[#allocation9 + $0xb0] sm:$0xff]
        %v1088 = vld [vmem:[#allocation9 + $0xb8] sm:$0xff]
        %v1089 = vld [vmem:[#allocation9 + $0xc0] sm:$0xff]
        %v1090 = vld [vmem:[#allocation9 + $0xc8] sm:$0xff]
        %v1091 = vld [vmem:[#allocation9 + $0xd0] sm:$0xff]
        %v1092 = vld [vmem:[#allocation9 + $0xd8] sm:$0xff]
        %v1093 = vld [vmem:[#allocation9 + $0xe0] sm:$0xff]
        %v1094 = vld [vmem:[#allocation9 + $0xe8] sm:$0xff]
        %v1095 = vld [vmem:[#allocation9 + $0xf0] sm:$0xff]
        %v1096 = vld [vmem:[#allocation9 + $0xf8] sm:$0xff]
        %1097 = vmatpush.msra.mxu0 %v1096
        %1098 = vmatpush.msra.mxu0 %v1095
        %1099 = vmatpush.msra.mxu0 %v1094
        %1100 = vmatpush.msra.mxu0 %v1093
        %1101 = vmatpush.msra.mxu0 %v1092
        %1102 = vmatpush.msra.mxu0 %v1091
        %1103 = vmatpush.msra.mxu0 %v1090
        %1104 = vmatpush.msra.mxu0 %v1089
        %1105 = vmatpush.msra.mxu0 %v1088
        %1106 = vmatpush.msra.mxu0 %v1087
        %1107 = vmatpush.msra.mxu0 %v1086
        %1108 = vmatpush.msra.mxu0 %v1085
        %1109 = vmatpush.msra.mxu0 %v1084
        %1110 = vmatpush.msra.mxu0 %v1083
        %1111 = vmatpush.msra.mxu0 %v1082
        %1112 = vmatpush.msra.mxu0 %v1081
        %1113 = vmatmul.f32.gmra.mxu0 %v1080
        %v1114 = vpop.f32.mrf.mxu0
        %v1115 = vadd.f32 0.0, %v1114
        %1116 = vdwg.mxu0
        %1117 = vmatpush.msra.mxu0 %v1079
        %1118 = vmatpush.msra.mxu0 %v1078
        %1119 = vmatpush.msra.mxu0 %v1077
        %1120 = vmatpush.msra.mxu0 %v1076
        %1121 = vmatpush.msra.mxu0 %v1075
        %1122 = vmatpush.msra.mxu0 %v1074
        %1123 = vmatpush.msra.mxu0 %v1073
        %1124 = vmatpush.msra.mxu0 %v1072
        %1125 = vmatpush.msra.mxu0 %v1071
        %1126 = vmatpush.msra.mxu0 %v1070
        %1127 = vmatpush.msra.mxu0 %v1069
        %1128 = vmatpush.msra.mxu0 %v1068
        %1129 = vmatpush.msra.mxu0 %v1067
        %1130 = vmatpush.msra.mxu0 %v1066
        %1131 = vmatpush.msra.mxu0 %v1065
        %1132 = vmatpush.msra.mxu0 %v1064
        %1133 = vmatmul.f32.gmra.mxu0 %v1063
        %v1134 = vpop.f32.mrf.mxu0
        %v1135 = vadd.f32 %v1115, %v1134
        %1136 = vdwg.mxu0
        %v1137 = vld [vmem:[#allocation2 + $0x8] sm:$0xf]
        %v1138 = vld [vmem:[#allocation9 + $0x100] sm:$0xff]
        %v1139 = vld [vmem:[#allocation9 + $0x108] sm:$0xff]
        %v1140 = vld [vmem:[#allocation9 + $0x110] sm:$0xff]
        %v1141 = vld [vmem:[#allocation9 + $0x118] sm:$0xff]
        %v1142 = vld [vmem:[#allocation9 + $0x120] sm:$0xff]
        %v1143 = vld [vmem:[#allocation9 + $0x128] sm:$0xff]
        %v1144 = vld [vmem:[#allocation9 + $0x130] sm:$0xff]
        %v1145 = vld [vmem:[#allocation9 + $0x138] sm:$0xff]
        %v1146 = vld [vmem:[#allocation9 + $0x140] sm:$0xff]
        %v1147 = vld [vmem:[#allocation9 + $0x148] sm:$0xff]
        %v1148 = vld [vmem:[#allocation9 + $0x150] sm:$0xff]
        %v1149 = vld [vmem:[#allocation9 + $0x158] sm:$0xff]
        %v1150 = vld [vmem:[#allocation9 + $0x160] sm:$0xff]
        %v1151 = vld [vmem:[#allocation9 + $0x168] sm:$0xff]
        %v1152 = vld [vmem:[#allocation9 + $0x170] sm:$0xff]
        %v1153 = vld [vmem:[#allocation9 + $0x178] sm:$0xff]
        %1154 = vmatpush.msra.mxu0 %v1153
        %1155 = vmatpush.msra.mxu0 %v1152
        %1156 = vmatpush.msra.mxu0 %v1151
        %1157 = vmatpush.msra.mxu0 %v1150
        %1158 = vmatpush.msra.mxu0 %v1149
        %1159 = vmatpush.msra.mxu0 %v1148
        %1160 = vmatpush.msra.mxu0 %v1147
        %1161 = vmatpush.msra.mxu0 %v1146
        %1162 = vmatpush.msra.mxu0 %v1145
        %1163 = vmatpush.msra.mxu0 %v1144
        %1164 = vmatpush.msra.mxu0 %v1143
        %1165 = vmatpush.msra.mxu0 %v1142
        %1166 = vmatpush.msra.mxu0 %v1141
        %1167 = vmatpush.msra.mxu0 %v1140
        %1168 = vmatpush.msra.mxu0 %v1139
        %1169 = vmatpush.msra.mxu0 %v1138
        %1170 = vmatmul.f32.gmra.mxu0 %v1137
        %v1171 = vpop.f32.mrf.mxu0
        %v1172 = vadd.f32 0.0, %v1171
        %1173 = vdwg.mxu0
        %v1174 = vadd.f32 %v1135, %v1172
        %v1175 = vld [vmem:[#allocation2 + $0xc] sm:$0xf]
        %v1176 = vld [vmem:[#allocation9 + $0x180] sm:$0xff]
        %v1177 = vld [vmem:[#allocation9 + $0x188] sm:$0xff]
        %v1178 = vld [vmem:[#allocation9 + $0x190] sm:$0xff]
        %v1179 = vld [vmem:[#allocation9 + $0x198] sm:$0xff]
        %v1180 = vld [vmem:[#allocation9 + $0x1a0] sm:$0xff]
        %v1181 = vld [vmem:[#allocation9 + $0x1a8] sm:$0xff]
        %v1182 = vld [vmem:[#allocation9 + $0x1b0] sm:$0xff]
        %v1183 = vld [vmem:[#allocation9 + $0x1b8] sm:$0xff]
        %v1184 = vld [vmem:[#allocation9 + $0x1c0] sm:$0xff]
        %v1185 = vld [vmem:[#allocation9 + $0x1c8] sm:$0xff]
        %v1186 = vld [vmem:[#allocation9 + $0x1d0] sm:$0xff]
        %v1187 = vld [vmem:[#allocation9 + $0x1d8] sm:$0xff]
        %v1188 = vld [vmem:[#allocation9 + $0x1e0] sm:$0xff]
        %v1189 = vld [vmem:[#allocation9 + $0x1e8] sm:$0xff]
        %v1190 = vld [vmem:[#allocation9 + $0x1f0] sm:$0xff]
        %v1191 = vld [vmem:[#allocation9 + $0x1f8] sm:$0xff]
        %1192 = vmatpush.msra.mxu0 %v1191
        %1193 = vmatpush.msra.mxu0 %v1190
        %1194 = vmatpush.msra.mxu0 %v1189
        %1195 = vmatpush.msra.mxu0 %v1188
        %1196 = vmatpush.msra.mxu0 %v1187
        %1197 = vmatpush.msra.mxu0 %v1186
        %1198 = vmatpush.msra.mxu0 %v1185
        %1199 = vmatpush.msra.mxu0 %v1184
        %1200 = vmatpush.msra.mxu0 %v1183
        %1201 = vmatpush.msra.mxu0 %v1182
        %1202 = vmatpush.msra.mxu0 %v1181
        %1203 = vmatpush.msra.mxu0 %v1180
        %1204 = vmatpush.msra.mxu0 %v1179
        %1205 = vmatpush.msra.mxu0 %v1178
        %1206 = vmatpush.msra.mxu0 %v1177
        %1207 = vmatpush.msra.mxu0 %v1176
        %1208 = vmatmul.f32.gmra.mxu0 %v1175
        %v1209 = vpop.f32.mrf.mxu0
        %v1210 = vadd.f32 0.0, %v1209
        %1211 = vdwg.mxu0
        %v1212 = vadd.f32 %v1174, %v1210
        %v1213 = vld [vmem:[%s10] sm:$0x1]
        %v1215 = vperm.slane %v1213, 0
        %v1217 = vadd.f32 %v1212, %v1215
        %v1218 = vmax.f32 %v1217, 0.0
        %v1219 = vld [vmem:[%s11] sm:$0xff]
        %v1220 = vld [vmem:[%s11 + $0x8] sm:$0xff]
        %v1221 = vld [vmem:[%s11 + $0x10] sm:$0xff]
        %v1222 = vld [vmem:[%s11 + $0x18] sm:$0xff]
        %v1223 = vld [vmem:[%s11 + $0x20] sm:$0xff]
        %v1224 = vld [vmem:[%s11 + $0x28] sm:$0xff]
        %v1225 = vld [vmem:[%s11 + $0x30] sm:$0xff]
        %v1226 = vld [vmem:[%s11 + $0x38] sm:$0xff]
        %v1227 = vld [vmem:[%s11 + $0x40] sm:$0xff]
        %v1228 = vld [vmem:[%s11 + $0x48] sm:$0xff]
        %v1229 = vld [vmem:[%s11 + $0x50] sm:$0xff]
        %v1230 = vld [vmem:[%s11 + $0x58] sm:$0xff]
        %v1231 = vld [vmem:[%s11 + $0x60] sm:$0xff]
        %v1232 = vld [vmem:[%s11 + $0x68] sm:$0xff]
        %v1233 = vld [vmem:[%s11 + $0x70] sm:$0xff]
        %v1234 = vld [vmem:[%s11 + $0x78] sm:$0xff]
        %v1235 = vld [vmem:[%s12] sm:$0x1]
        %v1237 = vperm.slane %v1235, 0
        %1239 = vmatpush.msra.mxu0 %v1234
        %1240 = vmatpush.msra.mxu0 %v1233
        %1241 = vmatpush.msra.mxu0 %v1232
        %1242 = vmatpush.msra.mxu0 %v1231
        %1243 = vmatpush.msra.mxu0 %v1230
        %1244 = vmatpush.msra.mxu0 %v1229
        %1245 = vmatpush.msra.mxu0 %v1228
        %1246 = vmatpush.msra.mxu0 %v1227
        %1247 = vmatpush.msra.mxu0 %v1226
        %1248 = vmatpush.msra.mxu0 %v1225
        %1249 = vmatpush.msra.mxu0 %v1224
        %1250 = vmatpush.msra.mxu0 %v1223
        %1251 = vmatpush.msra.mxu0 %v1222
        %1252 = vmatpush.msra.mxu0 %v1221
        %1253 = vmatpush.msra.mxu0 %v1220
        %1254 = vmatpush.msra.mxu0 %v1219
        %1255 = vmatmul.f32.gmra.mxu0 %v1218
        %v1256 = vpop.f32.mrf.mxu0
        %v1257 = vadd.f32 %v1237, %v1256
        %1258 = vdwg.mxu0
        %v1259 = vmax.f32 %v1257, 0.0
        %1260 = vst [vmem:[#allocation3] sm:$0xf] %v1259
        %v1261 = vld [vmem:[#allocation3] sm:$0x1]
        %v1262 = vld [vmem:[#allocation10] sm:$0xff]
        %v1263 = vld [vmem:[#allocation10 + $0x8] sm:$0xff]
        %v1264 = vld [vmem:[#allocation10 + $0x10] sm:$0xff]
        %v1265 = vld [vmem:[#allocation10 + $0x18] sm:$0xff]
        %v1266 = vld [vmem:[#allocation10 + $0x20] sm:$0xff]
        %v1267 = vld [vmem:[#allocation10 + $0x28] sm:$0xff]
        %v1268 = vld [vmem:[#allocation10 + $0x30] sm:$0xff]
        %v1269 = vld [vmem:[#allocation10 + $0x38] sm:$0xff]
        %v1270 = vld [vmem:[#allocation10 + $0x40] sm:$0xff]
        %v1271 = vld [vmem:[#allocation10 + $0x48] sm:$0xff]
        %v1272 = vld [vmem:[#allocation10 + $0x50] sm:$0xff]
        %v1273 = vld [vmem:[#allocation10 + $0x58] sm:$0xff]
        %v1274 = vld [vmem:[#allocation10 + $0x60] sm:$0xff]
        %v1275 = vld [vmem:[#allocation10 + $0x68] sm:$0xff]
        %v1276 = vld [vmem:[#allocation10 + $0x70] sm:$0xff]
        %v1277 = vld [vmem:[#allocation10 + $0x78] sm:$0xff]
        %v1278 = vld [vmem:[#allocation3 + $0x1] sm:$0x1]
        %v1279 = vld [vmem:[#allocation10 + $0x80] sm:$0xff]
        %v1280 = vld [vmem:[#allocation10 + $0x88] sm:$0xff]
        %v1281 = vld [vmem:[#allocation10 + $0x90] sm:$0xff]
        %v1282 = vld [vmem:[#allocation10 + $0x98] sm:$0xff]
        %v1283 = vld [vmem:[#allocation10 + $0xa0] sm:$0xff]
        %v1284 = vld [vmem:[#allocation10 + $0xa8] sm:$0xff]
        %v1285 = vld [vmem:[#allocation10 + $0xb0] sm:$0xff]
        %v1286 = vld [vmem:[#allocation10 + $0xb8] sm:$0xff]
        %v1287 = vld [vmem:[#allocation10 + $0xc0] sm:$0xff]
        %v1288 = vld [vmem:[#allocation10 + $0xc8] sm:$0xff]
        %v1289 = vld [vmem:[#allocation10 + $0xd0] sm:$0xff]
        %v1290 = vld [vmem:[#allocation10 + $0xd8] sm:$0xff]
        %v1291 = vld [vmem:[#allocation10 + $0xe0] sm:$0xff]
        %v1292 = vld [vmem:[#allocation10 + $0xe8] sm:$0xff]
        %v1293 = vld [vmem:[#allocation10 + $0xf0] sm:$0xff]
        %v1294 = vld [vmem:[#allocation10 + $0xf8] sm:$0xff]
        %1295 = vmatpush.msra.mxu0 %v1294
        %1296 = vmatpush.msra.mxu0 %v1293
        %1297 = vmatpush.msra.mxu0 %v1292
        %1298 = vmatpush.msra.mxu0 %v1291
        %1299 = vmatpush.msra.mxu0 %v1290
        %1300 = vmatpush.msra.mxu0 %v1289
        %1301 = vmatpush.msra.mxu0 %v1288
        %1302 = vmatpush.msra.mxu0 %v1287
        %1303 = vmatpush.msra.mxu0 %v1286
        %1304 = vmatpush.msra.mxu0 %v1285
        %1305 = vmatpush.msra.mxu0 %v1284
        %1306 = vmatpush.msra.mxu0 %v1283
        %1307 = vmatpush.msra.mxu0 %v1282
        %1308 = vmatpush.msra.mxu0 %v1281
        %1309 = vmatpush.msra.mxu0 %v1280
        %1310 = vmatpush.msra.mxu0 %v1279
        %1311 = vmatmul.f32.gmra.mxu0 %v1278
        %v1312 = vpop.f32.mrf.mxu0
        %v1313 = vadd.f32 0.0, %v1312
        %1314 = vdwg.mxu0
        %1315 = vmatpush.msra.mxu0 %v1277
        %1316 = vmatpush.msra.mxu0 %v1276
        %1317 = vmatpush.msra.mxu0 %v1275
        %1318 = vmatpush.msra.mxu0 %v1274
        %1319 = vmatpush.msra.mxu0 %v1273
        %1320 = vmatpush.msra.mxu0 %v1272
        %1321 = vmatpush.msra.mxu0 %v1271
        %1322 = vmatpush.msra.mxu0 %v1270
        %1323 = vmatpush.msra.mxu0 %v1269
        %1324 = vmatpush.msra.mxu0 %v1268
        %1325 = vmatpush.msra.mxu0 %v1267
        %1326 = vmatpush.msra.mxu0 %v1266
        %1327 = vmatpush.msra.mxu0 %v1265
        %1328 = vmatpush.msra.mxu0 %v1264
        %1329 = vmatpush.msra.mxu0 %v1263
        %1330 = vmatpush.msra.mxu0 %v1262
        %1331 = vmatmul.f32.gmra.mxu0 %v1261
        %v1332 = vpop.f32.mrf.mxu0
        %v1333 = vadd.f32 %v1313, %v1332
        %1334 = vdwg.mxu0
        %v1335 = vld [vmem:[#allocation3 + $0x2] sm:$0x1]
        %v1336 = vld [vmem:[#allocation10 + $0x100] sm:$0xff]
        %v1337 = vld [vmem:[#allocation10 + $0x108] sm:$0xff]
        %v1338 = vld [vmem:[#allocation10 + $0x110] sm:$0xff]
        %v1339 = vld [vmem:[#allocation10 + $0x118] sm:$0xff]
        %v1340 = vld [vmem:[#allocation10 + $0x120] sm:$0xff]
        %v1341 = vld [vmem:[#allocation10 + $0x128] sm:$0xff]
        %v1342 = vld [vmem:[#allocation10 + $0x130] sm:$0xff]
        %v1343 = vld [vmem:[#allocation10 + $0x138] sm:$0xff]
        %v1344 = vld [vmem:[#allocation10 + $0x140] sm:$0xff]
        %v1345 = vld [vmem:[#allocation10 + $0x148] sm:$0xff]
        %v1346 = vld [vmem:[#allocation10 + $0x150] sm:$0xff]
        %v1347 = vld [vmem:[#allocation10 + $0x158] sm:$0xff]
        %v1348 = vld [vmem:[#allocation10 + $0x160] sm:$0xff]
        %v1349 = vld [vmem:[#allocation10 + $0x168] sm:$0xff]
        %v1350 = vld [vmem:[#allocation10 + $0x170] sm:$0xff]
        %v1351 = vld [vmem:[#allocation10 + $0x178] sm:$0xff]
        %1352 = vmatpush.msra.mxu0 %v1351
        %1353 = vmatpush.msra.mxu0 %v1350
        %1354 = vmatpush.msra.mxu0 %v1349
        %1355 = vmatpush.msra.mxu0 %v1348
        %1356 = vmatpush.msra.mxu0 %v1347
        %1357 = vmatpush.msra.mxu0 %v1346
        %1358 = vmatpush.msra.mxu0 %v1345
        %1359 = vmatpush.msra.mxu0 %v1344
        %1360 = vmatpush.msra.mxu0 %v1343
        %1361 = vmatpush.msra.mxu0 %v1342
        %1362 = vmatpush.msra.mxu0 %v1341
        %1363 = vmatpush.msra.mxu0 %v1340
        %1364 = vmatpush.msra.mxu0 %v1339
        %1365 = vmatpush.msra.mxu0 %v1338
        %1366 = vmatpush.msra.mxu0 %v1337
        %1367 = vmatpush.msra.mxu0 %v1336
        %1368 = vmatmul.f32.gmra.mxu0 %v1335
        %v1369 = vpop.f32.mrf.mxu0
        %v1370 = vadd.f32 0.0, %v1369
        %1371 = vdwg.mxu0
        %v1372 = vadd.f32 %v1333, %v1370
        %v1373 = vld [vmem:[#allocation3 + $0x3] sm:$0x1]
        %v1374 = vld [vmem:[#allocation10 + $0x180] sm:$0xff]
        %v1375 = vld [vmem:[#allocation10 + $0x188] sm:$0xff]
        %v1376 = vld [vmem:[#allocation10 + $0x190] sm:$0xff]
        %v1377 = vld [vmem:[#allocation10 + $0x198] sm:$0xff]
        %v1378 = vld [vmem:[#allocation10 + $0x1a0] sm:$0xff]
        %v1379 = vld [vmem:[#allocation10 + $0x1a8] sm:$0xff]
        %v1380 = vld [vmem:[#allocation10 + $0x1b0] sm:$0xff]
        %v1381 = vld [vmem:[#allocation10 + $0x1b8] sm:$0xff]
        %v1382 = vld [vmem:[#allocation10 + $0x1c0] sm:$0xff]
        %v1383 = vld [vmem:[#allocation10 + $0x1c8] sm:$0xff]
        %v1384 = vld [vmem:[#allocation10 + $0x1d0] sm:$0xff]
        %v1385 = vld [vmem:[#allocation10 + $0x1d8] sm:$0xff]
        %v1386 = vld [vmem:[#allocation10 + $0x1e0] sm:$0xff]
        %v1387 = vld [vmem:[#allocation10 + $0x1e8] sm:$0xff]
        %v1388 = vld [vmem:[#allocation10 + $0x1f0] sm:$0xff]
        %v1389 = vld [vmem:[#allocation10 + $0x1f8] sm:$0xff]
        %1390 = vmatpush.msra.mxu0 %v1389
        %1391 = vmatpush.msra.mxu0 %v1388
        %1392 = vmatpush.msra.mxu0 %v1387
        %1393 = vmatpush.msra.mxu0 %v1386
        %1394 = vmatpush.msra.mxu0 %v1385
        %1395 = vmatpush.msra.mxu0 %v1384
        %1396 = vmatpush.msra.mxu0 %v1383
        %1397 = vmatpush.msra.mxu0 %v1382
        %1398 = vmatpush.msra.mxu0 %v1381
        %1399 = vmatpush.msra.mxu0 %v1380
        %1400 = vmatpush.msra.mxu0 %v1379
        %1401 = vmatpush.msra.mxu0 %v1378
        %1402 = vmatpush.msra.mxu0 %v1377
        %1403 = vmatpush.msra.mxu0 %v1376
        %1404 = vmatpush.msra.mxu0 %v1375
        %1405 = vmatpush.msra.mxu0 %v1374
        %1406 = vmatmul.f32.gmra.mxu0 %v1373
        %v1407 = vpop.f32.mrf.mxu0
        %v1408 = vadd.f32 0.0, %v1407
        %1409 = vdwg.mxu0
        %v1410 = vadd.f32 %v1372, %v1408
        %v1411 = vld [vmem:[%s14] sm:$0x1]
        %v1412 = vadd.f32 %v1410, %v1411
        %v1413 = vmax.f32 %v1412, 0.0
        %v1414 = vld [vmem:[#allocation12] sm:$0xff]
        %v1415 = vld [vmem:[#allocation12 + $0x8] sm:$0xff]
        %v1416 = vld [vmem:[#allocation12 + $0x10] sm:$0xff]
        %v1417 = vld [vmem:[#allocation12 + $0x18] sm:$0xff]
        %v1418 = vld [vmem:[#allocation12 + $0x20] sm:$0xff]
        %v1419 = vld [vmem:[#allocation12 + $0x28] sm:$0xff]
        %v1420 = vld [vmem:[#allocation12 + $0x30] sm:$0xff]
        %v1421 = vld [vmem:[#allocation12 + $0x38] sm:$0xff]
        %v1422 = vld [vmem:[#allocation12 + $0x40] sm:$0xff]
        %v1423 = vld [vmem:[#allocation12 + $0x48] sm:$0xff]
        %v1424 = vld [vmem:[#allocation12 + $0x50] sm:$0xff]
        %v1425 = vld [vmem:[#allocation12 + $0x58] sm:$0xff]
        %v1426 = vld [vmem:[#allocation12 + $0x60] sm:$0xff]
        %v1427 = vld [vmem:[#allocation12 + $0x68] sm:$0xff]
        %v1428 = vld [vmem:[#allocation12 + $0x70] sm:$0xff]
        %v1429 = vld [vmem:[#allocation12 + $0x78] sm:$0xff]
        %v1430 = vld [vmem:[%s16] sm:$0x1]
        %1431 = vmatpush.msra.mxu0 %v1429
        %1432 = vmatpush.msra.mxu0 %v1428
        %1433 = vmatpush.msra.mxu0 %v1427
        %1434 = vmatpush.msra.mxu0 %v1426
        %1435 = vmatpush.msra.mxu0 %v1425
        %1436 = vmatpush.msra.mxu0 %v1424
        %1437 = vmatpush.msra.mxu0 %v1423
        %1438 = vmatpush.msra.mxu0 %v1422
        %1439 = vmatpush.msra.mxu0 %v1421
        %1440 = vmatpush.msra.mxu0 %v1420
        %1441 = vmatpush.msra.mxu0 %v1419
        %1442 = vmatpush.msra.mxu0 %v1418
        %1443 = vmatpush.msra.mxu0 %v1417
        %1444 = vmatpush.msra.mxu0 %v1416
        %1445 = vmatpush.msra.mxu0 %v1415
        %1446 = vmatpush.msra.mxu0 %v1414
        %1447 = vmatmul.f32.gmra.mxu0 %v1413
        %v1448 = vpop.f32.mrf.mxu0
        %v1449 = vadd.f32 %v1430, %v1448
        %1450 = vdwg.mxu0
        %v1451 = vmax.f32 %v1449, 0.0
        %v1452 = vld [vmem:[#allocation13] sm:$0xff]
        %v1453 = vld [vmem:[#allocation13 + $0x8] sm:$0xff]
        %v1454 = vld [vmem:[#allocation13 + $0x10] sm:$0xff]
        %v1455 = vld [vmem:[#allocation13 + $0x18] sm:$0xff]
        %v1456 = vld [vmem:[#allocation13 + $0x20] sm:$0xff]
        %v1457 = vld [vmem:[#allocation13 + $0x28] sm:$0xff]
        %v1458 = vld [vmem:[#allocation13 + $0x30] sm:$0xff]
        %v1459 = vld [vmem:[#allocation13 + $0x38] sm:$0xff]
        %v1460 = vld [vmem:[#allocation13 + $0x40] sm:$0xff]
        %v1461 = vld [vmem:[#allocation13 + $0x48] sm:$0xff]
        %v1462 = vld [vmem:[#allocation13 + $0x50] sm:$0xff]
        %v1463 = vld [vmem:[#allocation13 + $0x58] sm:$0xff]
        %v1464 = vld [vmem:[#allocation13 + $0x60] sm:$0xff]
        %v1465 = vld [vmem:[#allocation13 + $0x68] sm:$0xff]
        %v1466 = vld [vmem:[#allocation13 + $0x70] sm:$0xff]
        %v1467 = vld [vmem:[#allocation13 + $0x78] sm:$0xff]
        %v1468 = vld [vmem:[%s18] sm:$0x1]
        %1469 = vmatpush.msra.mxu0 %v1467
        %1470 = vmatpush.msra.mxu0 %v1466
        %1471 = vmatpush.msra.mxu0 %v1465
        %1472 = vmatpush.msra.mxu0 %v1464
        %1473 = vmatpush.msra.mxu0 %v1463
        %1474 = vmatpush.msra.mxu0 %v1462
        %1475 = vmatpush.msra.mxu0 %v1461
        %1476 = vmatpush.msra.mxu0 %v1460
        %1477 = vmatpush.msra.mxu0 %v1459
        %1478 = vmatpush.msra.mxu0 %v1458
        %1479 = vmatpush.msra.mxu0 %v1457
        %1480 = vmatpush.msra.mxu0 %v1456
        %1481 = vmatpush.msra.mxu0 %v1455
        %1482 = vmatpush.msra.mxu0 %v1454
        %1483 = vmatpush.msra.mxu0 %v1453
        %1484 = vmatpush.msra.mxu0 %v1452
        %1485 = vmatmul.f32.gmra.mxu0 %v1451
        %v1486 = vpop.f32.mrf.mxu0
        %v1487 = vadd.f32 %v1468, %v1486
        %1488 = vdwg.mxu0
        %v1489 = vmax.f32 %v1487, 0.0
        %v1490 = vld [vmem:[#allocation15] sm:$0xff]
        %v1491 = vld [vmem:[#allocation15 + $0x8] sm:$0xff]
        %v1492 = vld [vmem:[#allocation15 + $0x10] sm:$0xff]
        %v1493 = vld [vmem:[#allocation15 + $0x18] sm:$0xff]
        %v1494 = vld [vmem:[#allocation15 + $0x20] sm:$0xff]
        %v1495 = vld [vmem:[#allocation15 + $0x28] sm:$0xff]
        %v1496 = vld [vmem:[#allocation15 + $0x30] sm:$0xff]
        %v1497 = vld [vmem:[#allocation15 + $0x38] sm:$0xff]
        %v1498 = vld [vmem:[#allocation15 + $0x40] sm:$0xff]
        %v1499 = vld [vmem:[#allocation15 + $0x48] sm:$0xff]
        %v1500 = vld [vmem:[#allocation15 + $0x50] sm:$0xff]
        %v1501 = vld [vmem:[#allocation15 + $0x58] sm:$0xff]
        %v1502 = vld [vmem:[#allocation15 + $0x60] sm:$0xff]
        %v1503 = vld [vmem:[#allocation15 + $0x68] sm:$0xff]
        %v1504 = vld [vmem:[#allocation15 + $0x70] sm:$0xff]
        %v1505 = vld [vmem:[#allocation15 + $0x78] sm:$0xff]
        %v1506 = vld [vmem:[#allocation15 + $0x80] sm:$0xff]
        %v1507 = vld [vmem:[#allocation15 + $0x88] sm:$0xff]
        %v1508 = vld [vmem:[#allocation15 + $0x90] sm:$0xff]
        %v1509 = vld [vmem:[#allocation15 + $0x98] sm:$0xff]
        %v1510 = vld [vmem:[#allocation15 + $0xa0] sm:$0xff]
        %v1511 = vld [vmem:[#allocation15 + $0xa8] sm:$0xff]
        %v1512 = vld [vmem:[#allocation15 + $0xb0] sm:$0xff]
        %v1513 = vld [vmem:[#allocation15 + $0xb8] sm:$0xff]
        %v1514 = vld [vmem:[#allocation15 + $0xc0] sm:$0xff]
        %v1515 = vld [vmem:[#allocation15 + $0xc8] sm:$0xff]
        %v1516 = vld [vmem:[#allocation15 + $0xd0] sm:$0xff]
        %v1517 = vld [vmem:[#allocation15 + $0xd8] sm:$0xff]
        %v1518 = vld [vmem:[#allocation15 + $0xe0] sm:$0xff]
        %v1519 = vld [vmem:[#allocation15 + $0xe8] sm:$0xff]
        %v1520 = vld [vmem:[#allocation15 + $0xf0] sm:$0xff]
        %v1521 = vld [vmem:[#allocation15 + $0xf8] sm:$0xff]
        %v1522 = vld [vmem:[#allocation15 + $0x100] sm:$0xff]
        %v1523 = vld [vmem:[#allocation15 + $0x108] sm:$0xff]
        %v1524 = vld [vmem:[#allocation15 + $0x110] sm:$0xff]
        %v1525 = vld [vmem:[#allocation15 + $0x118] sm:$0xff]
        %v1526 = vld [vmem:[#allocation15 + $0x120] sm:$0xff]
        %v1527 = vld [vmem:[#allocation15 + $0x128] sm:$0xff]
        %v1528 = vld [vmem:[#allocation15 + $0x130] sm:$0xff]
        %v1529 = vld [vmem:[#allocation15 + $0x138] sm:$0xff]
        %v1530 = vld [vmem:[#allocation15 + $0x140] sm:$0xff]
        %v1531 = vld [vmem:[#allocation15 + $0x148] sm:$0xff]
        %v1532 = vld [vmem:[#allocation15 + $0x150] sm:$0xff]
        %v1533 = vld [vmem:[#allocation15 + $0x158] sm:$0xff]
        %v1534 = vld [vmem:[#allocation15 + $0x160] sm:$0xff]
        %v1535 = vld [vmem:[#allocation15 + $0x168] sm:$0xff]
        %v1536 = vld [vmem:[#allocation15 + $0x170] sm:$0xff]
        %v1537 = vld [vmem:[#allocation15 + $0x178] sm:$0xff]
        %v1538 = vld [vmem:[#allocation15 + $0x180] sm:$0xff]
        %v1539 = vld [vmem:[#allocation15 + $0x188] sm:$0xff]
        %v1540 = vld [vmem:[#allocation15 + $0x190] sm:$0xff]
        %v1541 = vld [vmem:[#allocation15 + $0x198] sm:$0xff]
        %v1542 = vld [vmem:[#allocation15 + $0x1a0] sm:$0xff]
        %v1543 = vld [vmem:[#allocation15 + $0x1a8] sm:$0xff]
        %v1544 = vld [vmem:[#allocation15 + $0x1b0] sm:$0xff]
        %v1545 = vld [vmem:[#allocation15 + $0x1b8] sm:$0xff]
        %v1546 = vld [vmem:[#allocation15 + $0x1c0] sm:$0xff]
        %v1547 = vld [vmem:[#allocation15 + $0x1c8] sm:$0xff]
        %v1548 = vld [vmem:[#allocation15 + $0x1d0] sm:$0xff]
        %v1549 = vld [vmem:[#allocation15 + $0x1d8] sm:$0xff]
        %v1550 = vld [vmem:[#allocation15 + $0x1e0] sm:$0xff]
        %v1551 = vld [vmem:[#allocation15 + $0x1e8] sm:$0xff]
        %v1552 = vld [vmem:[#allocation15 + $0x1f0] sm:$0xff]
        %v1553 = vld [vmem:[#allocation15 + $0x1f8] sm:$0xff]
        %v1554 = vld [vmem:[%s20] sm:$0xf]
        %v1556 = vperm.slane %v1554, 0
        %v1557 = vperm.slane %v1554, 1
        %v1558 = vperm.slane %v1554, 2
        %v1559 = vperm.slane %v1554, 3
        %1564 = vmatpush.msra.mxu0 %v1550
        %1565 = vmatpush.msra.mxu0 %v1546
        %1566 = vmatpush.msra.mxu0 %v1542
        %1567 = vmatpush.msra.mxu0 %v1538
        %1568 = vmatpush.msra.mxu0 %v1534
        %1569 = vmatpush.msra.mxu0 %v1530
        %1570 = vmatpush.msra.mxu0 %v1526
        %1571 = vmatpush.msra.mxu0 %v1522
        %1572 = vmatpush.msra.mxu0 %v1518
        %1573 = vmatpush.msra.mxu0 %v1514
        %1574 = vmatpush.msra.mxu0 %v1510
        %1575 = vmatpush.msra.mxu0 %v1506
        %1576 = vmatpush.msra.mxu0 %v1502
        %1577 = vmatpush.msra.mxu0 %v1498
        %1578 = vmatpush.msra.mxu0 %v1494
        %1579 = vmatpush.msra.mxu0 %v1490
        %1580 = vmatmul.f32.gmra.mxu0 %v1489
        %v1581 = vpop.f32.mrf.mxu0
        %v1582 = vadd.f32 %v1556, %v1581
        %1583 = vdwg.mxu0
        %1584 = vmatpush.msra.mxu0 %v1551
        %1585 = vmatpush.msra.mxu0 %v1547
        %1586 = vmatpush.msra.mxu0 %v1543
        %1587 = vmatpush.msra.mxu0 %v1539
        %1588 = vmatpush.msra.mxu0 %v1535
        %1589 = vmatpush.msra.mxu0 %v1531
        %1590 = vmatpush.msra.mxu0 %v1527
        %1591 = vmatpush.msra.mxu0 %v1523
        %1592 = vmatpush.msra.mxu0 %v1519
        %1593 = vmatpush.msra.mxu0 %v1515
        %1594 = vmatpush.msra.mxu0 %v1511
        %1595 = vmatpush.msra.mxu0 %v1507
        %1596 = vmatpush.msra.mxu0 %v1503
        %1597 = vmatpush.msra.mxu0 %v1499
        %1598 = vmatpush.msra.mxu0 %v1495
        %1599 = vmatpush.msra.mxu0 %v1491
        %1600 = vmatmul.f32.gmra.mxu0 %v1489
        %v1601 = vpop.f32.mrf.mxu0
        %v1602 = vadd.f32 %v1557, %v1601
        %1603 = vdwg.mxu0
        %1604 = vmatpush.msra.mxu0 %v1552
        %1605 = vmatpush.msra.mxu0 %v1548
        %1606 = vmatpush.msra.mxu0 %v1544
        %1607 = vmatpush.msra.mxu0 %v1540
        %1608 = vmatpush.msra.mxu0 %v1536
        %1609 = vmatpush.msra.mxu0 %v1532
        %1610 = vmatpush.msra.mxu0 %v1528
        %1611 = vmatpush.msra.mxu0 %v1524
        %1612 = vmatpush.msra.mxu0 %v1520
        %1613 = vmatpush.msra.mxu0 %v1516
        %1614 = vmatpush.msra.mxu0 %v1512
        %1615 = vmatpush.msra.mxu0 %v1508
        %1616 = vmatpush.msra.mxu0 %v1504
        %1617 = vmatpush.msra.mxu0 %v1500
        %1618 = vmatpush.msra.mxu0 %v1496
        %1619 = vmatpush.msra.mxu0 %v1492
        %1620 = vmatmul.f32.gmra.mxu0 %v1489
        %v1621 = vpop.f32.mrf.mxu0
        %v1622 = vadd.f32 %v1558, %v1621
        %1623 = vdwg.mxu0
        %1624 = vmatpush.msra.mxu0 %v1553
        %1625 = vmatpush.msra.mxu0 %v1549
        %1626 = vmatpush.msra.mxu0 %v1545
        %1627 = vmatpush.msra.mxu0 %v1541
        %1628 = vmatpush.msra.mxu0 %v1537
        %1629 = vmatpush.msra.mxu0 %v1533
        %1630 = vmatpush.msra.mxu0 %v1529
        %1631 = vmatpush.msra.mxu0 %v1525
        %1632 = vmatpush.msra.mxu0 %v1521
        %1633 = vmatpush.msra.mxu0 %v1517
        %1634 = vmatpush.msra.mxu0 %v1513
        %1635 = vmatpush.msra.mxu0 %v1509
        %1636 = vmatpush.msra.mxu0 %v1505
        %1637 = vmatpush.msra.mxu0 %v1501
        %1638 = vmatpush.msra.mxu0 %v1497
        %1639 = vmatpush.msra.mxu0 %v1493
        %1640 = vmatmul.f32.gmra.mxu0 %v1489
        %v1641 = vpop.f32.mrf.mxu0
        %v1642 = vadd.f32 %v1559, %v1641
        %1643 = vdwg.mxu0
        %v1644 = vmax.f32 %v1582, 0.0
        %v1645 = vmax.f32 %v1602, 0.0
        %v1646 = vmax.f32 %v1622, 0.0
        %v1647 = vmax.f32 %v1642, 0.0
        %v1648 = vld [vmem:[#allocation16] sm:$0xff]
        %v1649 = vld [vmem:[#allocation16 + $0x8] sm:$0xff]
        %v1650 = vld [vmem:[#allocation16 + $0x10] sm:$0xff]
        %v1651 = vld [vmem:[#allocation16 + $0x18] sm:$0xff]
        %v1652 = vld [vmem:[#allocation16 + $0x20] sm:$0xff]
        %v1653 = vld [vmem:[#allocation16 + $0x28] sm:$0xff]
        %v1654 = vld [vmem:[#allocation16 + $0x30] sm:$0xff]
        %v1655 = vld [vmem:[#allocation16 + $0x38] sm:$0xff]
        %v1656 = vld [vmem:[#allocation16 + $0x40] sm:$0xff]
        %v1657 = vld [vmem:[#allocation16 + $0x48] sm:$0xff]
        %v1658 = vld [vmem:[#allocation16 + $0x50] sm:$0xff]
        %v1659 = vld [vmem:[#allocation16 + $0x58] sm:$0xff]
        %v1660 = vld [vmem:[#allocation16 + $0x60] sm:$0xff]
        %v1661 = vld [vmem:[#allocation16 + $0x68] sm:$0xff]
        %v1662 = vld [vmem:[#allocation16 + $0x70] sm:$0xff]
        %v1663 = vld [vmem:[#allocation16 + $0x78] sm:$0xff]
        %v1664 = vld [vmem:[#allocation16 + $0x80] sm:$0xff]
        %v1665 = vld [vmem:[#allocation16 + $0x88] sm:$0xff]
        %v1666 = vld [vmem:[#allocation16 + $0x90] sm:$0xff]
        %v1667 = vld [vmem:[#allocation16 + $0x98] sm:$0xff]
        %v1668 = vld [vmem:[#allocation16 + $0xa0] sm:$0xff]
        %v1669 = vld [vmem:[#allocation16 + $0xa8] sm:$0xff]
        %v1670 = vld [vmem:[#allocation16 + $0xb0] sm:$0xff]
        %v1671 = vld [vmem:[#allocation16 + $0xb8] sm:$0xff]
        %v1672 = vld [vmem:[#allocation16 + $0xc0] sm:$0xff]
        %v1673 = vld [vmem:[#allocation16 + $0xc8] sm:$0xff]
        %v1674 = vld [vmem:[#allocation16 + $0xd0] sm:$0xff]
        %v1675 = vld [vmem:[#allocation16 + $0xd8] sm:$0xff]
        %v1676 = vld [vmem:[#allocation16 + $0xe0] sm:$0xff]
        %v1677 = vld [vmem:[#allocation16 + $0xe8] sm:$0xff]
        %v1678 = vld [vmem:[#allocation16 + $0xf0] sm:$0xff]
        %v1679 = vld [vmem:[#allocation16 + $0xf8] sm:$0xff]
        %v1680 = vld [vmem:[#allocation16 + $0x100] sm:$0xff]
        %v1681 = vld [vmem:[#allocation16 + $0x108] sm:$0xff]
        %v1682 = vld [vmem:[#allocation16 + $0x110] sm:$0xff]
        %v1683 = vld [vmem:[#allocation16 + $0x118] sm:$0xff]
        %v1684 = vld [vmem:[#allocation16 + $0x120] sm:$0xff]
        %v1685 = vld [vmem:[#allocation16 + $0x128] sm:$0xff]
        %v1686 = vld [vmem:[#allocation16 + $0x130] sm:$0xff]
        %v1687 = vld [vmem:[#allocation16 + $0x138] sm:$0xff]
        %v1688 = vld [vmem:[#allocation16 + $0x140] sm:$0xff]
        %v1689 = vld [vmem:[#allocation16 + $0x148] sm:$0xff]
        %v1690 = vld [vmem:[#allocation16 + $0x150] sm:$0xff]
        %v1691 = vld [vmem:[#allocation16 + $0x158] sm:$0xff]
        %v1692 = vld [vmem:[#allocation16 + $0x160] sm:$0xff]
        %v1693 = vld [vmem:[#allocation16 + $0x168] sm:$0xff]
        %v1694 = vld [vmem:[#allocation16 + $0x170] sm:$0xff]
        %v1695 = vld [vmem:[#allocation16 + $0x178] sm:$0xff]
        %v1696 = vld [vmem:[#allocation16 + $0x180] sm:$0xff]
        %v1697 = vld [vmem:[#allocation16 + $0x188] sm:$0xff]
        %v1698 = vld [vmem:[#allocation16 + $0x190] sm:$0xff]
        %v1699 = vld [vmem:[#allocation16 + $0x198] sm:$0xff]
        %v1700 = vld [vmem:[#allocation16 + $0x1a0] sm:$0xff]
        %v1701 = vld [vmem:[#allocation16 + $0x1a8] sm:$0xff]
        %v1702 = vld [vmem:[#allocation16 + $0x1b0] sm:$0xff]
        %v1703 = vld [vmem:[#allocation16 + $0x1b8] sm:$0xff]
        %v1704 = vld [vmem:[#allocation16 + $0x1c0] sm:$0xff]
        %v1705 = vld [vmem:[#allocation16 + $0x1c8] sm:$0xff]
        %v1706 = vld [vmem:[#allocation16 + $0x1d0] sm:$0xff]
        %v1707 = vld [vmem:[#allocation16 + $0x1d8] sm:$0xff]
        %v1708 = vld [vmem:[#allocation16 + $0x1e0] sm:$0xff]
        %v1709 = vld [vmem:[#allocation16 + $0x1e8] sm:$0xff]
        %v1710 = vld [vmem:[#allocation16 + $0x1f0] sm:$0xff]
        %v1711 = vld [vmem:[#allocation16 + $0x1f8] sm:$0xff]
        %v1712 = vld [vmem:[%s22] sm:$0x1]
        %1713 = vmatpush.msra.mxu0 %v1663
        %1714 = vmatpush.msra.mxu0 %v1662
        %1715 = vmatpush.msra.mxu0 %v1661
        %1716 = vmatpush.msra.mxu0 %v1660
        %1717 = vmatpush.msra.mxu0 %v1659
        %1718 = vmatpush.msra.mxu0 %v1658
        %1719 = vmatpush.msra.mxu0 %v1657
        %1720 = vmatpush.msra.mxu0 %v1656
        %1721 = vmatpush.msra.mxu0 %v1655
        %1722 = vmatpush.msra.mxu0 %v1654
        %1723 = vmatpush.msra.mxu0 %v1653
        %1724 = vmatpush.msra.mxu0 %v1652
        %1725 = vmatpush.msra.mxu0 %v1651
        %1726 = vmatpush.msra.mxu0 %v1650
        %1727 = vmatpush.msra.mxu0 %v1649
        %1728 = vmatpush.msra.mxu0 %v1648
        %1729 = vmatmul.f32.gmra.mxu0 %v1644
        %v1730 = vpop.f32.mrf.mxu0
        %v1731 = vadd.f32 %v1712, %v1730
        %1732 = vdwg.mxu0
        %1733 = vmatpush.msra.mxu0 %v1679
        %1734 = vmatpush.msra.mxu0 %v1678
        %1735 = vmatpush.msra.mxu0 %v1677
        %1736 = vmatpush.msra.mxu0 %v1676
        %1737 = vmatpush.msra.mxu0 %v1675
        %1738 = vmatpush.msra.mxu0 %v1674
        %1739 = vmatpush.msra.mxu0 %v1673
        %1740 = vmatpush.msra.mxu0 %v1672
        %1741 = vmatpush.msra.mxu0 %v1671
        %1742 = vmatpush.msra.mxu0 %v1670
        %1743 = vmatpush.msra.mxu0 %v1669
        %1744 = vmatpush.msra.mxu0 %v1668
        %1745 = vmatpush.msra.mxu0 %v1667
        %1746 = vmatpush.msra.mxu0 %v1666
        %1747 = vmatpush.msra.mxu0 %v1665
        %1748 = vmatpush.msra.mxu0 %v1664
        %1749 = vmatmul.f32.gmra.mxu0 %v1645
        %v1750 = vpop.f32.mrf.mxu0
        %v1751 = vadd.f32 %v1731, %v1750
        %1752 = vdwg.mxu0
        %1753 = vmatpush.msra.mxu0 %v1695
        %1754 = vmatpush.msra.mxu0 %v1694
        %1755 = vmatpush.msra.mxu0 %v1693
        %1756 = vmatpush.msra.mxu0 %v1692
        %1757 = vmatpush.msra.mxu0 %v1691
        %1758 = vmatpush.msra.mxu0 %v1690
        %1759 = vmatpush.msra.mxu0 %v1689
        %1760 = vmatpush.msra.mxu0 %v1688
        %1761 = vmatpush.msra.mxu0 %v1687
        %1762 = vmatpush.msra.mxu0 %v1686
        %1763 = vmatpush.msra.mxu0 %v1685
        %1764 = vmatpush.msra.mxu0 %v1684
        %1765 = vmatpush.msra.mxu0 %v1683
        %1766 = vmatpush.msra.mxu0 %v1682
        %1767 = vmatpush.msra.mxu0 %v1681
        %1768 = vmatpush.msra.mxu0 %v1680
        %1769 = vmatmul.f32.gmra.mxu0 %v1646
        %v1770 = vpop.f32.mrf.mxu0
        %v1771 = vadd.f32 %v1751, %v1770
        %1772 = vdwg.mxu0
        %1773 = vmatpush.msra.mxu0 %v1711
        %1774 = vmatpush.msra.mxu0 %v1710
        %1775 = vmatpush.msra.mxu0 %v1709
        %1776 = vmatpush.msra.mxu0 %v1708
        %1777 = vmatpush.msra.mxu0 %v1707
        %1778 = vmatpush.msra.mxu0 %v1706
        %1779 = vmatpush.msra.mxu0 %v1705
        %1780 = vmatpush.msra.mxu0 %v1704
        %1781 = vmatpush.msra.mxu0 %v1703
        %1782 = vmatpush.msra.mxu0 %v1702
        %1783 = vmatpush.msra.mxu0 %v1701
        %1784 = vmatpush.msra.mxu0 %v1700
        %1785 = vmatpush.msra.mxu0 %v1699
        %1786 = vmatpush.msra.mxu0 %v1698
        %1787 = vmatpush.msra.mxu0 %v1697
        %1788 = vmatpush.msra.mxu0 %v1696
        %1789 = vmatmul.f32.gmra.mxu0 %v1647
        %v1790 = vpop.f32.mrf.mxu0
        %v1791 = vadd.f32 %v1771, %v1790
        %1792 = vdwg.mxu0
        %1793 = vst [vmem:[%s879] sm:$0x1] %v1791
        %1794 = vst [vmem:[%s885] sm:$0x1] %v1451
        %s1795 = sand.u32 %s548, 1
        %s1796 = scalar_lea.sflag [#allocation6], %s1795
        %s1797 = sand.u32 %s548, 1
        %s1798 = scalar_lea.vmem [#allocation18], %s1797
        %s1799 = sand.u32 %s574, 1
        %s1800 = scalar_lea.sflag [#allocation20], %s1799
        %s1801 = sand.u32 %s574, 1
        %s1802 = scalar_lea.vmem [#allocation19], %s1801
        // Predicated region
        $region145: #{forward.1} parent=111 // pred_check
          %p1803 = pneg %p558
        $region146: #{forward.1} parent=111 // pred_check_branch
          %1805 = sbr.rel (%p1803) target = $region148
        $region147: #{forward.1} parent=111 // pred_region
          %1807 = vsyncadd %s1796, 0
          %s1808 = scalar_lea.hbm %s23, %s47
          %s1810 = sshll.u32 %s1798, 4
          %s1811 = int_to_ptr.vmem [resolvable:$true] %s1810
          %s1812 = sshll.u32 %s1808, 4
          %s1813 = int_to_ptr.hbm [resolvable:$true] %s1812
          %1815 = dma.vmem_to_hbm [thread:$0]  %s1811, 16, %s1813, %s1796
        $region148: #{forward.1} parent=111 // pred_fallthru
          _
        // Predicated region
        $region149: #{forward.1} parent=111 // pred_check
          %p1816 = pneg %p584
        $region150: #{forward.1} parent=111 // pred_check_branch
          %1818 = sbr.rel (%p1816) target = $region152
        $region151: #{forward.1} parent=111 // pred_region
          %1820 = vsyncadd %s1800, 0
          %s1821 = scalar_lea.hbm %s24, %s47
          %s1823 = sshll.u32 %s1802, 4
          %s1824 = int_to_ptr.vmem [resolvable:$true] %s1823
          %s1825 = sshll.u32 %s1821, 4
          %s1826 = int_to_ptr.hbm [resolvable:$true] %s1825
          %1828 = dma.vmem_to_hbm [thread:$0]  %s1824, 16, %s1826, %s1800
        $region152: #{forward.1} parent=111 // pred_fallthru
          _
      $region112: #{forward.1} parent=5 // pred_fallthru
        _
      %p1829 = scmp.le.s32.totalorder 2, %s42
      // Predicated region
      $region153: #{forward.1} parent=5 // pred_check
        %p1830 = pneg %p1829
      $region154: #{forward.1} parent=5 // pred_check_branch
        %1832 = sbr.rel (%p1830) target = $region156
      $region155: #{forward.1} parent=5 // pred_region
        %s1833 = ssub.s32 %s42, 2
        // Predicated region
        $region157: #{forward.1} parent=155 // pred_check
          %p1834 = pneg %p564
        $region158: #{forward.1} parent=155 // pred_check_branch
          %1836 = sbr.rel (%p1834) target = $region160
        $region159: #{forward.1} parent=155 // pred_region
          %s1837 = sand.u32 %s549, 1
          %s1838 = scalar_lea.sflag [#allocation6], %s1837
          %s1839 = sand.u32 %s549, 1
          %s1840 = scalar_lea.vmem [#allocation18], %s1839
          %1842 = dma.done %s1838, 16
        $region160: #{forward.1} parent=155 // pred_fallthru
          _
        // Predicated region
        $region161: #{forward.1} parent=155 // pred_check
          %p1843 = pneg %p590
        $region162: #{forward.1} parent=155 // pred_check_branch
          %1845 = sbr.rel (%p1843) target = $region164
        $region163: #{forward.1} parent=155 // pred_region
          %s1846 = sand.u32 %s575, 1
          %s1847 = scalar_lea.sflag [#allocation20], %s1846
          %s1848 = sand.u32 %s575, 1
          %s1849 = scalar_lea.vmem [#allocation19], %s1848
          %1851 = dma.done %s1847, 16
        $region164: #{forward.1} parent=155 // pred_fallthru
          _
      $region156: #{forward.1} parent=5 // pred_fallthru
        _
    $region6: #{forward.1} parent=1 // loop_footer
      %s46 = sadd.s32 1, %s42
    $region7: #{forward.1} parent=1 // loop_footer_branch
      %41 = sbr.rel target = $region3
    $region8: #{forward.1} parent=1 // loop_exit
      _
    %1852 = vsyncpa [#allocation5], 1
    %s1853 = scalar_lea.sflag [#allocation5], 1
    %1854 = vsyncpa %s1853, 1
    %1855 = vsyncpa [#allocation8], 1
    %1856 = vsyncpa [#allocation11], 1
    %1857 = vsyncpa [#allocation14], 1
    %1858 = vsyncpa [#allocation17], 1
    %1859 = vsyncpa [#allocation6], 1
    %s1860 = scalar_lea.sflag [#allocation6], 1
    %1861 = vsyncpa %s1860, 1
    %1862 = vsyncpa [#allocation20], 1
    %s1863 = scalar_lea.sflag [#allocation20], 1
    %1864 = vsyncpa %s1863, 1

</llo_original>
